<compile_context>
chip_gen: v6e
topology: v6e:2x2x1
jax: 0.10.0
libtpu: 0.0.40
codegen_flags: <defaults>
</compile_context>

<pallas_src>
import functools

import jax
import jax.numpy as jnp
from jax.experimental import pallas as pl
from jax.experimental.pallas import tpu as pltpu

DP = 128       # lane-dense padded output-feature width
SUBLANE = 8    # f32 sublane tile (contraction-dim padding granularity)


def _round_up(x, m):
    return ((x + m - 1) // m) * m


def _fused_rgcn_kernel(a_ref, h0_ref, *rest, layer_meta, num_rels, num_nodes):
    """One grid step = one graph; the full layer stack runs fused in VMEM.

    a_ref  : (N, R*N) f32   A_flat[dst, r*N + src] for this graph
    h0_ref : (N, 1)   f32   initial node features (din == 1)
    rest   : (w_0, b_0, w_1, b_1, ..., out_ref)
             layer with din == 1 : w (R, DP)           -- weight rows W_r[0, :]
             other layers        : w (R, din_pad, DP)  -- per-relation weights
             b : (1, DP)
    out_ref: (N, DP)  f32   final layer output (lane-dense; valid cols sliced outside)
    """
    out_ref = rest[-1]
    wb = rest[:-1]
    N = num_nodes
    R = num_rels

    # Per-relation adjacency tiles: load once, reuse in every layer.
    a_r = [a_ref[:, r * N:(r + 1) * N] for r in range(R)]     # each (N, N)

    h = h0_ref[...]                                           # (N, 1)

    for i, (din_pad, act) in enumerate(layer_meta):
        w_ref = wb[2 * i]
        b_ref = wb[2 * i + 1]

        acc = jnp.zeros((N, DP), jnp.float32)
        if din_pad == 1:
            # din == 1: H @ W_r is a rank-1 outer product -> pure VPU, tiny weights.
            w_rows = w_ref[...]                               # (R, DP)
            for r in range(R):
                hw_r = h * w_rows[r:r + 1, :]                 # (N,1)*(1,DP) -> (N,DP)
                acc = acc + jnp.dot(a_r[r], hw_r,
                                    preferred_element_type=jnp.float32)
        else:
            h_in = h[:, :din_pad]                             # (N, din_pad)
            for r in range(R):
                hw_r = jnp.dot(h_in, w_ref[r],                # (N, DP)
                               preferred_element_type=jnp.float32)
                acc = acc + jnp.dot(a_r[r], hw_r,
                                    preferred_element_type=jnp.float32)

        y = acc + b_ref[...]                                  # bias broadcast (1,DP)
        if act == "relu":
            h = jnp.maximum(y, 0.0)
        else:  # sigmoid (output layer)
            h = jax.nn.sigmoid(y)

    out_ref[...] = h.astype(out_ref.dtype)


def pack_rgcn_params(params):
    """Pad per-relation weights/biases: dout -> 128 lanes, din -> sublane tile only."""
    packed, layer_meta = [], []
    n_layers = len(params)
    for i, (w, b) in enumerate(params):
        R, din, dout = w.shape
        if max(din, dout) > DP:
            raise ValueError(f"layer {i}: dims ({din},{dout}) exceed padded width {DP}")
        act = "sigmoid" if i == n_layers - 1 else "relu"
        if din == 1:
            w_p = jnp.zeros((R, DP), jnp.float32).at[:, :dout].set(w[:, 0, :])
            din_pad = 1
        else:
            din_pad = _round_up(din, SUBLANE)
            w_p = jnp.zeros((R, din_pad, DP), jnp.float32).at[:, :din, :dout].set(w)
        b_p = jnp.zeros((1, DP), jnp.float32).at[0, :dout].set(b)
        packed += [w_p, b_p]
        layer_meta.append((din_pad, act))
    return packed, tuple(layer_meta)


def prepare_adjacency(adj):
    """adj (B, R, N, N) -> A_flat (B, N, R*N) with A_flat[b, dst, r*N + src]."""
    B, R, N, _ = adj.shape
    return jnp.transpose(adj, (0, 2, 1, 3)).reshape(B, N, R * N)


def _check_vmem_budget(a_flat, packed, N, limit_bytes=16 * 1024 * 1024):
    """Guard the 'everything resident' design (v7x scoped default is 32 MiB)."""
    per_graph = (a_flat.shape[1] * a_flat.shape[2] + N * 1 + N * DP) * 4
    weights = sum(int(p.size) * p.dtype.itemsize for p in packed)
    total = weights + 2 * per_graph     # per-graph blocks are double-buffered
    if total > limit_bytes:
        raise ValueError(
            f"RGCN fused working set {total} B exceeds conservative VMEM budget "
            f"{limit_bytes} B; shrink dims/layers or tile layers over a grid axis.")


def make_rgcn_forward(adj, params):
    """Hoist adjacency flattening + weight padding out of the per-call path."""
    B, R, N, _ = adj.shape
    a_flat = prepare_adjacency(adj)
    packed, layer_meta = pack_rgcn_params(params)
    dout_last = params[-1][0].shape[2]

    _check_vmem_budget(a_flat, packed, N)

    kernel = functools.partial(_fused_rgcn_kernel,
                               layer_meta=layer_meta, num_rels=R, num_nodes=N)

    def _const_map(ndim):
        return lambda b: (0,) * ndim

    in_specs = [
        pl.BlockSpec((None, N, R * N), lambda b: (b, 0, 0)),   # per-graph A_flat
        pl.BlockSpec((None, N, 1), lambda b: (b, 0, 0)),       # per-graph h0
    ] + [pl.BlockSpec(p.shape, _const_map(p.ndim)) for p in packed]  # resident weights

    call = pl.pallas_call(
        kernel,
        grid=(B,),
        in_specs=in_specs,
        out_specs=pl.BlockSpec((None, N, DP), lambda b: (b, 0, 0)),
        out_shape=jax.ShapeDtypeStruct((B, N, DP), jnp.float32),
        compiler_params=pltpu.CompilerParams(
            dimension_semantics=("parallel",)),   # v7x: batch sharded across both TCs
    )

    def forward(h0):
        out_pad = call(a_flat, h0, *packed)
        return out_pad[:, :, :dout_last]

    return forward


def init_rgcn_params(key, in_dim, out_dim, num_rels):
    """Deterministic per-relation weights (Xavier-uniform-ish) + zero bias."""
    (kw,) = jax.random.split(key, 1)
    limit = jnp.sqrt(6.0 / (in_dim + out_dim))
    w = jax.random.uniform(kw, (num_rels, in_dim, out_dim),
                           minval=-limit, maxval=limit, dtype=jnp.float32)
    b = jnp.zeros((out_dim,), dtype=jnp.float32)
    return w, b


def build_dense_rel_adj(src, dst, etypes, num_rels, num_nodes):
    """A[r, dst, src] += 1 for each edge (sum aggregation over multi-edges)."""
    adj = jnp.zeros((num_rels, num_nodes, num_nodes), dtype=jnp.float32)
    return adj.at[etypes, dst, src].add(1.0)


if __name__ == "__main__":
    # --- synthetic graphs + model config (mirrors Model(dims, num_rels)) ---
    dims = [16, 32, 8]       # layer dims: 1 -> 16 -> 32 -> 8
    num_rels = 3
    N = 16                   # nodes per graph
    E = 40                   # edges per graph
    B = 4                    # batch of graphs (grid axis)

    key = jax.random.PRNGKey(0)
    k_src, k_dst, k_et, k_h, k_p = jax.random.split(key, 5)

    src = jax.random.randint(k_src, (B, E), 0, N)
    dst = jax.random.randint(k_dst, (B, E), 0, N)
    etypes = jax.random.randint(k_et, (B, E), 0, num_rels)

    adj = jax.vmap(
        lambda s, d, e: build_dense_rel_adj(s, d, e, num_rels, N))(src, dst, etypes)

    # forward() starts from h = torch.rand(len(g.nodes())).view(-1, 1)
    h0 = jax.random.uniform(k_h, (B, N, 1), dtype=jnp.float32)

    # layer dim chain: (1, dims[0]), (dims[0], dims[1]), ..., (dims[-2], dims[-1])
    layer_dims = [(1, dims[0])] + list(zip(dims[:-1], dims[1:]))
    pkeys = jax.random.split(k_p, len(layer_dims))
    params = [init_rgcn_params(pk, di, do, num_rels)
              for pk, (di, do) in zip(pkeys, layer_dims)]

    # TODO(synk): lin_output=True (nn.Linear output head) path not implemented;
    # default RelGraphConv+sigmoid output path only.
    forward = make_rgcn_forward(adj, params)
    out = jax.block_until_ready(forward(h0))

    # pure-JAX reference check of the fused kernel math
    def ref_forward(adj_b, h_b):
        h = h_b
        for i, (w, b) in enumerate(params):
            y = jnp.einsum("rnm,md,rde->ne", adj_b, h, w) + b[None, :]
            h = jnp.maximum(y, 0.0) if i < len(params) - 1 else jax.nn.sigmoid(y)
        return h

    href = jax.vmap(ref_forward)(adj, h0)

    assert out.shape == (B, N, dims[-1])
    assert jnp.allclose(out, href, atol=1e-5, rtol=1e-5), \
        float(jnp.max(jnp.abs(out - href)))
    print("KERNEL_OK")
</pallas_src>

<mosaic_0001>
module attributes {stable_mosaic.version = 11 : i64} {
  func.func @_fused_rgcn_kernel(%arg0: i32, %arg1: memref<1x16x48xf32, #tpu.memory_space<vmem>>, %arg2: memref<1x16x1xf32, #tpu.memory_space<vmem>>, %arg3: memref<3x128xf32, #tpu.memory_space<vmem>>, %arg4: memref<1x128xf32, #tpu.memory_space<vmem>>, %arg5: memref<3x16x128xf32, #tpu.memory_space<vmem>>, %arg6: memref<1x128xf32, #tpu.memory_space<vmem>>, %arg7: memref<3x32x128xf32, #tpu.memory_space<vmem>>, %arg8: memref<1x128xf32, #tpu.memory_space<vmem>>, %arg9: memref<1x16x128xf32, #tpu.memory_space<vmem>>) attributes {dimension_semantics = [#tpu.dimension_semantics<parallel>], iteration_bounds = array<i64: 4>, scalar_prefetch = 0 : i64, scratch_operands = 0 : i64, tpu.core_type = #tpu.core_type<tc>, window_params = [{transform_indices = @transform_0, window_bounds = array<i64: 1, 16, 48>}, {transform_indices = @transform_1, window_bounds = array<i64: 1, 16, 1>}, {pipeline_mode = #tpu.pipeline_mode<synchronous>, transform_indices = @transform_2, window_bounds = array<i64: 3, 128>}, {pipeline_mode = #tpu.pipeline_mode<synchronous>, transform_indices = @transform_3, window_bounds = array<i64: 1, 128>}, {pipeline_mode = #tpu.pipeline_mode<synchronous>, transform_indices = @transform_4, window_bounds = array<i64: 3, 16, 128>}, {pipeline_mode = #tpu.pipeline_mode<synchronous>, transform_indices = @transform_5, window_bounds = array<i64: 1, 128>}, {pipeline_mode = #tpu.pipeline_mode<synchronous>, transform_indices = @transform_6, window_bounds = array<i64: 3, 32, 128>}, {pipeline_mode = #tpu.pipeline_mode<synchronous>, transform_indices = @transform_7, window_bounds = array<i64: 1, 128>}, {transform_indices = @transform_8, window_bounds = array<i64: 1, 16, 128>}]} {
    %c0 = arith.constant 0 : index
    %c0_0 = arith.constant 0 : index
    %c0_1 = arith.constant 0 : index
    %0 = vector.load %arg1[%c0, %c0_0, %c0_1] : memref<1x16x48xf32, #tpu.memory_space<vmem>>, vector<1x16x16xf32>
    %1 = vector.shape_cast %0 : vector<1x16x16xf32> to vector<16x16xf32>
    %c0_2 = arith.constant 0 : index
    %c0_3 = arith.constant 0 : index
    %c16 = arith.constant 16 : index
    %2 = vector.load %arg1[%c0_2, %c0_3, %c16] : memref<1x16x48xf32, #tpu.memory_space<vmem>>, vector<1x16x16xf32>
    %3 = vector.shape_cast %2 : vector<1x16x16xf32> to vector<16x16xf32>
    %c0_4 = arith.constant 0 : index
    %c0_5 = arith.constant 0 : index
    %c32 = arith.constant 32 : index
    %4 = vector.load %arg1[%c0_4, %c0_5, %c32] : memref<1x16x48xf32, #tpu.memory_space<vmem>>, vector<1x16x16xf32>
    %5 = vector.shape_cast %4 : vector<1x16x16xf32> to vector<16x16xf32>
    %c0_6 = arith.constant 0 : index
    %c0_7 = arith.constant 0 : index
    %c0_8 = arith.constant 0 : index
    %6 = vector.load %arg2[%c0_6, %c0_7, %c0_8] : memref<1x16x1xf32, #tpu.memory_space<vmem>>, vector<1x16x1xf32>
    %7 = vector.shape_cast %6 : vector<1x16x1xf32> to vector<16x1xf32>
    %cst = arith.constant 0.000000e+00 : f32
    %8 = vector.broadcast %cst : f32 to vector<16x128xf32>
    %c0_9 = arith.constant 0 : index
    %c0_10 = arith.constant 0 : index
    %9 = vector.load %arg3[%c0_9, %c0_10] : memref<3x128xf32, #tpu.memory_space<vmem>>, vector<3x128xf32>
    %10 = vector.extract_strided_slice %9 {offsets = [0, 0], sizes = [1, 128], strides = [1, 1]} : vector<3x128xf32> to vector<1x128xf32>
    %11 = vector.broadcast %7 : vector<16x1xf32> to vector<16x128xf32>
    %12 = vector.broadcast %10 : vector<1x128xf32> to vector<16x128xf32>
    %13 = arith.mulf %11, %12 : vector<16x128xf32>
    %cst_11 = arith.constant dense<0.000000e+00> : vector<16x128xf32>
    %14 = tpu.matmul %1, %13, %cst_11 {dimension_numbers = #tpu.dot_dimension_numbers<[1], [0], [0], [1], [0, 0, 1, 1], [], []>} : vector<16x16xf32>, vector<16x128xf32>, vector<16x128xf32> -> vector<16x128xf32>
    %15 = arith.addf %8, %14 : vector<16x128xf32>
    %16 = vector.extract_strided_slice %9 {offsets = [1, 0], sizes = [1, 128], strides = [1, 1]} : vector<3x128xf32> to vector<1x128xf32>
    %17 = vector.broadcast %7 : vector<16x1xf32> to vector<16x128xf32>
    %18 = vector.broadcast %16 : vector<1x128xf32> to vector<16x128xf32>
    %19 = arith.mulf %17, %18 : vector<16x128xf32>
    %cst_12 = arith.constant dense<0.000000e+00> : vector<16x128xf32>
    %20 = tpu.matmul %3, %19, %cst_12 {dimension_numbers = #tpu.dot_dimension_numbers<[1], [0], [0], [1], [0, 0, 1, 1], [], []>} : vector<16x16xf32>, vector<16x128xf32>, vector<16x128xf32> -> vector<16x128xf32>
    %21 = arith.addf %15, %20 : vector<16x128xf32>
    %22 = vector.extract_strided_slice %9 {offsets = [2, 0], sizes = [1, 128], strides = [1, 1]} : vector<3x128xf32> to vector<1x128xf32>
    %23 = vector.broadcast %7 : vector<16x1xf32> to vector<16x128xf32>
    %24 = vector.broadcast %22 : vector<1x128xf32> to vector<16x128xf32>
    %25 = arith.mulf %23, %24 : vector<16x128xf32>
    %cst_13 = arith.constant dense<0.000000e+00> : vector<16x128xf32>
    %26 = tpu.matmul %5, %25, %cst_13 {dimension_numbers = #tpu.dot_dimension_numbers<[1], [0], [0], [1], [0, 0, 1, 1], [], []>} : vector<16x16xf32>, vector<16x128xf32>, vector<16x128xf32> -> vector<16x128xf32>
    %27 = arith.addf %21, %26 : vector<16x128xf32>
    %c0_14 = arith.constant 0 : index
    %c0_15 = arith.constant 0 : index
    %28 = vector.load %arg4[%c0_14, %c0_15] : memref<1x128xf32, #tpu.memory_space<vmem>>, vector<1x128xf32>
    %29 = vector.broadcast %28 : vector<1x128xf32> to vector<16x128xf32>
    %30 = arith.addf %27, %29 : vector<16x128xf32>
    %cst_16 = arith.constant 0.000000e+00 : f32
    %31 = vector.broadcast %cst_16 : f32 to vector<16x128xf32>
    %32 = arith.maximumf %30, %31 : vector<16x128xf32>
    %cst_17 = arith.constant 0.000000e+00 : f32
    %33 = vector.broadcast %cst_17 : f32 to vector<16x128xf32>
    %34 = vector.extract_strided_slice %32 {offsets = [0, 0], sizes = [16, 16], strides = [1, 1]} : vector<16x128xf32> to vector<16x16xf32>
    %c0_18 = arith.constant 0 : index
    %c0_19 = arith.constant 0 : index
    %c0_20 = arith.constant 0 : index
    %35 = vector.load %arg5[%c0_18, %c0_19, %c0_20] : memref<3x16x128xf32, #tpu.memory_space<vmem>>, vector<1x16x128xf32>
    %36 = vector.shape_cast %35 : vector<1x16x128xf32> to vector<16x128xf32>
    %cst_21 = arith.constant dense<0.000000e+00> : vector<16x128xf32>
    %37 = tpu.matmul %34, %36, %cst_21 {dimension_numbers = #tpu.dot_dimension_numbers<[1], [0], [0], [1], [0, 0, 1, 1], [], []>} : vector<16x16xf32>, vector<16x128xf32>, vector<16x128xf32> -> vector<16x128xf32>
    %cst_22 = arith.constant dense<0.000000e+00> : vector<16x128xf32>
    %38 = tpu.matmul %1, %37, %cst_22 {dimension_numbers = #tpu.dot_dimension_numbers<[1], [0], [0], [1], [0, 0, 1, 1], [], []>} : vector<16x16xf32>, vector<16x128xf32>, vector<16x128xf32> -> vector<16x128xf32>
    %39 = arith.addf %33, %38 : vector<16x128xf32>
    %c1 = arith.constant 1 : index
    %c0_23 = arith.constant 0 : index
    %c0_24 = arith.constant 0 : index
    %40 = vector.load %arg5[%c1, %c0_23, %c0_24] : memref<3x16x128xf32, #tpu.memory_space<vmem>>, vector<1x16x128xf32>
    %41 = vector.shape_cast %40 : vector<1x16x128xf32> to vector<16x128xf32>
    %cst_25 = arith.constant dense<0.000000e+00> : vector<16x128xf32>
    %42 = tpu.matmul %34, %41, %cst_25 {dimension_numbers = #tpu.dot_dimension_numbers<[1], [0], [0], [1], [0, 0, 1, 1], [], []>} : vector<16x16xf32>, vector<16x128xf32>, vector<16x128xf32> -> vector<16x128xf32>
    %cst_26 = arith.constant dense<0.000000e+00> : vector<16x128xf32>
    %43 = tpu.matmul %3, %42, %cst_26 {dimension_numbers = #tpu.dot_dimension_numbers<[1], [0], [0], [1], [0, 0, 1, 1], [], []>} : vector<16x16xf32>, vector<16x128xf32>, vector<16x128xf32> -> vector<16x128xf32>
    %44 = arith.addf %39, %43 : vector<16x128xf32>
    %c2 = arith.constant 2 : index
    %c0_27 = arith.constant 0 : index
    %c0_28 = arith.constant 0 : index
    %45 = vector.load %arg5[%c2, %c0_27, %c0_28] : memref<3x16x128xf32, #tpu.memory_space<vmem>>, vector<1x16x128xf32>
    %46 = vector.shape_cast %45 : vector<1x16x128xf32> to vector<16x128xf32>
    %cst_29 = arith.constant dense<0.000000e+00> : vector<16x128xf32>
    %47 = tpu.matmul %34, %46, %cst_29 {dimension_numbers = #tpu.dot_dimension_numbers<[1], [0], [0], [1], [0, 0, 1, 1], [], []>} : vector<16x16xf32>, vector<16x128xf32>, vector<16x128xf32> -> vector<16x128xf32>
    %cst_30 = arith.constant dense<0.000000e+00> : vector<16x128xf32>
    %48 = tpu.matmul %5, %47, %cst_30 {dimension_numbers = #tpu.dot_dimension_numbers<[1], [0], [0], [1], [0, 0, 1, 1], [], []>} : vector<16x16xf32>, vector<16x128xf32>, vector<16x128xf32> -> vector<16x128xf32>
    %49 = arith.addf %44, %48 : vector<16x128xf32>
    %c0_31 = arith.constant 0 : index
    %c0_32 = arith.constant 0 : index
    %50 = vector.load %arg6[%c0_31, %c0_32] : memref<1x128xf32, #tpu.memory_space<vmem>>, vector<1x128xf32>
    %51 = vector.broadcast %50 : vector<1x128xf32> to vector<16x128xf32>
    %52 = arith.addf %49, %51 : vector<16x128xf32>
    %cst_33 = arith.constant 0.000000e+00 : f32
    %53 = vector.broadcast %cst_33 : f32 to vector<16x128xf32>
    %54 = arith.maximumf %52, %53 : vector<16x128xf32>
    %cst_34 = arith.constant 0.000000e+00 : f32
    %55 = vector.broadcast %cst_34 : f32 to vector<16x128xf32>
    %56 = vector.extract_strided_slice %54 {offsets = [0, 0], sizes = [16, 32], strides = [1, 1]} : vector<16x128xf32> to vector<16x32xf32>
    %c0_35 = arith.constant 0 : index
    %c0_36 = arith.constant 0 : index
    %c0_37 = arith.constant 0 : index
    %57 = vector.load %arg7[%c0_35, %c0_36, %c0_37] : memref<3x32x128xf32, #tpu.memory_space<vmem>>, vector<1x32x128xf32>
    %58 = vector.shape_cast %57 : vector<1x32x128xf32> to vector<32x128xf32>
    %cst_38 = arith.constant dense<0.000000e+00> : vector<16x128xf32>
    %59 = tpu.matmul %56, %58, %cst_38 {dimension_numbers = #tpu.dot_dimension_numbers<[1], [0], [0], [1], [0, 0, 1, 1], [], []>} : vector<16x32xf32>, vector<32x128xf32>, vector<16x128xf32> -> vector<16x128xf32>
    %cst_39 = arith.constant dense<0.000000e+00> : vector<16x128xf32>
    %60 = tpu.matmul %1, %59, %cst_39 {dimension_numbers = #tpu.dot_dimension_numbers<[1], [0], [0], [1], [0, 0, 1, 1], [], []>} : vector<16x16xf32>, vector<16x128xf32>, vector<16x128xf32> -> vector<16x128xf32>
    %61 = arith.addf %55, %60 : vector<16x128xf32>
    %c1_40 = arith.constant 1 : index
    %c0_41 = arith.constant 0 : index
    %c0_42 = arith.constant 0 : index
    %62 = vector.load %arg7[%c1_40, %c0_41, %c0_42] : memref<3x32x128xf32, #tpu.memory_space<vmem>>, vector<1x32x128xf32>
    %63 = vector.shape_cast %62 : vector<1x32x128xf32> to vector<32x128xf32>
    %cst_43 = arith.constant dense<0.000000e+00> : vector<16x128xf32>
    %64 = tpu.matmul %56, %63, %cst_43 {dimension_numbers = #tpu.dot_dimension_numbers<[1], [0], [0], [1], [0, 0, 1, 1], [], []>} : vector<16x32xf32>, vector<32x128xf32>, vector<16x128xf32> -> vector<16x128xf32>
    %cst_44 = arith.constant dense<0.000000e+00> : vector<16x128xf32>
    %65 = tpu.matmul %3, %64, %cst_44 {dimension_numbers = #tpu.dot_dimension_numbers<[1], [0], [0], [1], [0, 0, 1, 1], [], []>} : vector<16x16xf32>, vector<16x128xf32>, vector<16x128xf32> -> vector<16x128xf32>
    %66 = arith.addf %61, %65 : vector<16x128xf32>
    %c2_45 = arith.constant 2 : index
    %c0_46 = arith.constant 0 : index
    %c0_47 = arith.constant 0 : index
    %67 = vector.load %arg7[%c2_45, %c0_46, %c0_47] : memref<3x32x128xf32, #tpu.memory_space<vmem>>, vector<1x32x128xf32>
    %68 = vector.shape_cast %67 : vector<1x32x128xf32> to vector<32x128xf32>
    %cst_48 = arith.constant dense<0.000000e+00> : vector<16x128xf32>
    %69 = tpu.matmul %56, %68, %cst_48 {dimension_numbers = #tpu.dot_dimension_numbers<[1], [0], [0], [1], [0, 0, 1, 1], [], []>} : vector<16x32xf32>, vector<32x128xf32>, vector<16x128xf32> -> vector<16x128xf32>
    %cst_49 = arith.constant dense<0.000000e+00> : vector<16x128xf32>
    %70 = tpu.matmul %5, %69, %cst_49 {dimension_numbers = #tpu.dot_dimension_numbers<[1], [0], [0], [1], [0, 0, 1, 1], [], []>} : vector<16x16xf32>, vector<16x128xf32>, vector<16x128xf32> -> vector<16x128xf32>
    %71 = arith.addf %66, %70 : vector<16x128xf32>
    %c0_50 = arith.constant 0 : index
    %c0_51 = arith.constant 0 : index
    %72 = vector.load %arg8[%c0_50, %c0_51] : memref<1x128xf32, #tpu.memory_space<vmem>>, vector<1x128xf32>
    %73 = vector.broadcast %72 : vector<1x128xf32> to vector<16x128xf32>
    %74 = arith.addf %71, %73 : vector<16x128xf32>
    %75 = arith.negf %74 : vector<16x128xf32>
    %76 = math.exp %75 : vector<16x128xf32>
    %cst_52 = arith.constant 1.000000e+00 : f32
    %77 = vector.broadcast %cst_52 : f32 to vector<16x128xf32>
    %78 = arith.addf %77, %76 : vector<16x128xf32>
    %79 = arith.divf %77, %78 : vector<16x128xf32>
    %c0_53 = arith.constant 0 : index
    %c0_54 = arith.constant 0 : index
    %c0_55 = arith.constant 0 : index
    %80 = vector.load %arg9[%c0_53, %c0_54, %c0_55] : memref<1x16x128xf32, #tpu.memory_space<vmem>>, vector<1x16x128xf32>
    %81 = vector.shape_cast %80 : vector<1x16x128xf32> to vector<16x128xf32>
    %82 = vector.shape_cast %79 : vector<16x128xf32> to vector<1x16x128xf32>
    tpu.vector_store %arg9[%c0_53, %c0_54, %c0_55], %82 {strides = array<i32>} : memref<1x16x128xf32, #tpu.memory_space<vmem>>, vector<1x16x128xf32>,
    return
  }
  func.func @transform_0(%arg0: i32) -> (i32, i32, i32) {
    %c0_i32 = arith.constant 0 : i32
    %c0_i32_0 = arith.constant 0 : i32
    %c0_i32_1 = arith.constant 0 : i32
    return %arg0, %c0_i32, %c0_i32_0 : i32, i32, i32
  }
  func.func @transform_1(%arg0: i32) -> (i32, i32, i32) {
    %c0_i32 = arith.constant 0 : i32
    %c0_i32_0 = arith.constant 0 : i32
    %c0_i32_1 = arith.constant 0 : i32
    return %arg0, %c0_i32, %c0_i32_0 : i32, i32, i32
  }
  func.func @transform_2(%arg0: i32) -> (i32, i32) {
    %c0_i32 = arith.constant 0 : i32
    %c0_i32_0 = arith.constant 0 : i32
    %c0_i32_1 = arith.constant 0 : i32
    return %c0_i32, %c0_i32_0 : i32, i32
  }
  func.func @transform_3(%arg0: i32) -> (i32, i32) {
    %c0_i32 = arith.constant 0 : i32
    %c0_i32_0 = arith.constant 0 : i32
    %c0_i32_1 = arith.constant 0 : i32
    return %c0_i32, %c0_i32_0 : i32, i32
  }
  func.func @transform_4(%arg0: i32) -> (i32, i32, i32) {
    %c0_i32 = arith.constant 0 : i32
    %c0_i32_0 = arith.constant 0 : i32
    %c0_i32_1 = arith.constant 0 : i32
    %c0_i32_2 = arith.constant 0 : i32
    return %c0_i32, %c0_i32_0, %c0_i32_1 : i32, i32, i32
  }
  func.func @transform_5(%arg0: i32) -> (i32, i32) {
    %c0_i32 = arith.constant 0 : i32
    %c0_i32_0 = arith.constant 0 : i32
    %c0_i32_1 = arith.constant 0 : i32
    return %c0_i32, %c0_i32_0 : i32, i32
  }
  func.func @transform_6(%arg0: i32) -> (i32, i32, i32) {
    %c0_i32 = arith.constant 0 : i32
    %c0_i32_0 = arith.constant 0 : i32
    %c0_i32_1 = arith.constant 0 : i32
    %c0_i32_2 = arith.constant 0 : i32
    return %c0_i32, %c0_i32_0, %c0_i32_1 : i32, i32, i32
  }
  func.func @transform_7(%arg0: i32) -> (i32, i32) {
    %c0_i32 = arith.constant 0 : i32
    %c0_i32_0 = arith.constant 0 : i32
    %c0_i32_1 = arith.constant 0 : i32
    return %c0_i32, %c0_i32_0 : i32, i32
  }
  func.func @transform_8(%arg0: i32) -> (i32, i32, i32) {
    %c0_i32 = arith.constant 0 : i32
    %c0_i32_0 = arith.constant 0 : i32
    %c0_i32_1 = arith.constant 0 : i32
    return %arg0, %c0_i32, %c0_i32_0 : i32, i32, i32
  }
}

</mosaic_0001>

<llo_original>
// kernel: tpu_custom_call.1
$region0: #{tpu_custom_call.1}
  #allocation0 [shape = 'u32[]', space=smem, size = 0x4, offset = 0x4, fixed_abs, tag = 'smem constant byte address 0x4 - core index']
  #allocation1 [shape = 'u32[144,128]{1,0:T(1,128)}', space=vmem, size = 0x12000, scoped, tag = 'internal scratch']
  %s0 = inlined_call_operand.vmem [shape: f32[4,16,48], index: 0, kind: input, shape index: {}]
  %s1 = inlined_call_operand.vmem [shape: f32[4,16,1], index: 1, kind: input, shape index: {}]
  %s2 = inlined_call_operand.vmem [shape: f32[3,128], index: 2, kind: input, shape index: {}]
  %s3 = inlined_call_operand.vmem [shape: f32[1,128], index: 3, kind: input, shape index: {}]
  %s4 = inlined_call_operand.hbm [shape: f32[3,16,128], index: 4, kind: input, shape index: {}]
  %s5 = inlined_call_operand.vmem [shape: f32[1,128], index: 5, kind: input, shape index: {}]
  %s6 = inlined_call_operand.hbm [shape: f32[3,32,128], index: 6, kind: input, shape index: {}]
  %s7 = inlined_call_operand.vmem [shape: f32[1,128], index: 7, kind: input, shape index: {}]
  %s8 = inlined_call_operand.hbm [shape: f32[4,16,128], index: 8, kind: output, shape index: {}]
  %s9 = sld [smem:[#allocation0]]
  $region73: #{tpu_custom_call.1} parent=0
    _
  %s11 = ssub.s32 1, %s9
  %s12 = scalar_select 0, %s11, %s9
  $region1: #{tpu_custom_call.1} parent=0
    #allocation2 [shape = 'u8[24576]{0}', space=vmem, size = 0x6000, scoped, tag = 'input window, operand 4, single buffered']
    #allocation3 [shape = 's32[2]{0}', space=sflag, size = 0x8, scoped, tag = 'scoped memory for tpu_custom_call.1']
    #allocation4 [shape = 's32[2]{0}', space=sflag, size = 0x8, scoped, tag = 'scoped memory for tpu_custom_call.1']
    #allocation5 [shape = 'u8[49152]{0}', space=vmem, size = 0xc000, scoped, tag = 'input window, operand 6, single buffered']
    #allocation6 [shape = 's32[1]{0}', space=sflag, size = 0x4, scoped, tag = 'scoped memory for tpu_custom_call.1']
    #allocation7 [shape = 'u8[16384]{0}', space=vmem, size = 0x4000, scoped, tag = 'output window, operand 0']
    %13 = vsyncpa [#allocation3], 0
    %14 = vsyncpa [#allocation6], 0
    %15 = vsyncpa [#allocation4], 0
    %s16 = scalar_lea.sflag [#allocation4], 1
    %17 = vsyncpa %s16, 0
    loop: start=0, step=1, limit=6
    $region2: #{tpu_custom_call.1} parent=1 // loop_pre_header
      _
    $region3: #{tpu_custom_call.1} parent=1 // loop_header
      %s19 = sphi 0, %s23
      %p20 = scmp.ge.s32.totalorder %s19, 6
      %s29 = sphi 0, %s31
      %s32 = sphi 0, %s29
      %s33 = sphi 0, %s32
      %s49 = sphi 0, %s33
      %s55 = sphi 0, %s57
      %s58 = sphi 0, %s55
      %s59 = sphi 0, %s58
      %s75 = sphi 0, %s59
      %s79 = sphi 0, %s79
      %s81 = sphi 0, %s79
      %s82 = sphi 0, %s81
      %s96 = sphi 0, %s82
      %s100 = sphi 0, %s100
      %s102 = sphi 0, %s100
      %s103 = sphi 0, %s102
      %s117 = sphi 0, %s103
      %s121 = sphi 0, %s121
      %s123 = sphi 0, %s121
      %s124 = sphi 0, %s123
      %s138 = sphi 0, %s124
      %s142 = sphi 0, %s142
      %s144 = sphi 0, %s142
      %s145 = sphi 0, %s144
      %s159 = sphi 0, %s145
      %s163 = sphi 0, %s163
      %s165 = sphi 0, %s163
      %s166 = sphi 0, %s165
      %s180 = sphi 0, %s166
      %s184 = sphi 0, %s184
      %s186 = sphi 0, %s184
      %s187 = sphi 0, %s186
      %s201 = sphi 0, %s187
      %s207 = sphi 0, %s209
      %s210 = sphi 0, %s207
      %s211 = sphi 0, %s210
      %s227 = sphi 0, %s211
    $region4: #{tpu_custom_call.1} parent=1 // loop_header_branch
      %22 = sbr.rel (%p20) target = $region8
    $region5: #{tpu_custom_call.1} parent=1 // loop_body
      %s24 = ssub.s32 %s19, 1
      %s25 = ssub.s32 %s19, 2
      %s26 = sadd.s32 %s19, 1
      %s27 = ssub.s32 %s19, %s26
      %p28 = scmp.eq.s32.totalorder %s27, 0
      %s30 = sadd.s32 %s29, 1
      %s31 = scalar_select %p28, %s29, %s30
      %p34 = pneg %p28
      %p35 = scmp.eq.s32.totalorder %s19, 3
      %p36 = por %p34, %p35
      %p37 = scmp.ne.s32.totalorder %s29, %s32
      %p38 = scmp.eq.s32.totalorder %s19, 0
      %p39 = por %p37, %p38
      %p40 = scmp.ne.s32.totalorder %s29, %s32
      %p41 = scmp.eq.s32.totalorder %s24, 3
      %p42 = por %p40, %p41
      %p43 = scmp.ne.s32.totalorder %s32, %s33
      %p44 = scmp.eq.s32.totalorder %s24, 0
      %p45 = por %p43, %p44
      %p46 = scmp.ne.s32.totalorder %s32, %s33
      %p47 = scmp.eq.s32.totalorder %s25, 3
      %p48 = por %p46, %p47
      %p50 = scmp.ne.s32.totalorder %s33, %s49
      %p51 = scmp.eq.s32.totalorder %s25, 0
      %p52 = por %p50, %p51
      %s53 = ssub.s32 %s19, %s26
      %p54 = scmp.eq.s32.totalorder %s53, 0
      %s56 = sadd.s32 %s55, 1
      %s57 = scalar_select %p54, %s55, %s56
      %p60 = pneg %p54
      %p61 = scmp.eq.s32.totalorder %s19, 3
      %p62 = por %p60, %p61
      %p63 = scmp.ne.s32.totalorder %s55, %s58
      %p64 = scmp.eq.s32.totalorder %s19, 0
      %p65 = por %p63, %p64
      %p66 = scmp.ne.s32.totalorder %s55, %s58
      %p67 = scmp.eq.s32.totalorder %s24, 3
      %p68 = por %p66, %p67
      %p69 = scmp.ne.s32.totalorder %s58, %s59
      %p70 = scmp.eq.s32.totalorder %s24, 0
      %p71 = por %p69, %p70
      %p72 = scmp.ne.s32.totalorder %s58, %s59
      %p73 = scmp.eq.s32.totalorder %s25, 3
      %p74 = por %p72, %p73
      %p76 = scmp.ne.s32.totalorder %s59, %s75
      %p77 = scmp.eq.s32.totalorder %s25, 0
      %p78 = por %p76, %p77
      %s80 = sadd.s32 %s79, 1
      %p83 = scmp.eq.s32.totalorder %s19, 3
      %p84 = scmp.ne.s32.totalorder %s79, %s81
      %p85 = scmp.eq.s32.totalorder %s19, 0
      %p86 = por %p84, %p85
      %p87 = scmp.ne.s32.totalorder %s79, %s81
      %p88 = scmp.eq.s32.totalorder %s24, 3
      %p89 = por %p87, %p88
      %p90 = scmp.ne.s32.totalorder %s81, %s82
      %p91 = scmp.eq.s32.totalorder %s24, 0
      %p92 = por %p90, %p91
      %p93 = scmp.ne.s32.totalorder %s81, %s82
      %p94 = scmp.eq.s32.totalorder %s25, 3
      %p95 = por %p93, %p94
      %p97 = scmp.ne.s32.totalorder %s82, %s96
      %p98 = scmp.eq.s32.totalorder %s25, 0
      %p99 = por %p97, %p98
      %s101 = sadd.s32 %s100, 1
      %p104 = scmp.eq.s32.totalorder %s19, 3
      %p105 = scmp.ne.s32.totalorder %s100, %s102
      %p106 = scmp.eq.s32.totalorder %s19, 0
      %p107 = por %p105, %p106
      %p108 = scmp.ne.s32.totalorder %s100, %s102
      %p109 = scmp.eq.s32.totalorder %s24, 3
      %p110 = por %p108, %p109
      %p111 = scmp.ne.s32.totalorder %s102, %s103
      %p112 = scmp.eq.s32.totalorder %s24, 0
      %p113 = por %p111, %p112
      %p114 = scmp.ne.s32.totalorder %s102, %s103
      %p115 = scmp.eq.s32.totalorder %s25, 3
      %p116 = por %p114, %p115
      %p118 = scmp.ne.s32.totalorder %s103, %s117
      %p119 = scmp.eq.s32.totalorder %s25, 0
      %p120 = por %p118, %p119
      %s122 = sadd.s32 %s121, 1
      %p125 = scmp.eq.s32.totalorder %s19, 3
      %p126 = scmp.ne.s32.totalorder %s121, %s123
      %p127 = scmp.eq.s32.totalorder %s19, 0
      %p128 = por %p126, %p127
      %p129 = scmp.ne.s32.totalorder %s121, %s123
      %p130 = scmp.eq.s32.totalorder %s24, 3
      %p131 = por %p129, %p130
      %p132 = scmp.ne.s32.totalorder %s123, %s124
      %p133 = scmp.eq.s32.totalorder %s24, 0
      %p134 = por %p132, %p133
      %p135 = scmp.ne.s32.totalorder %s123, %s124
      %p136 = scmp.eq.s32.totalorder %s25, 3
      %p137 = por %p135, %p136
      %p139 = scmp.ne.s32.totalorder %s124, %s138
      %p140 = scmp.eq.s32.totalorder %s25, 0
      %p141 = por %p139, %p140
      %s143 = sadd.s32 %s142, 1
      %p146 = scmp.eq.s32.totalorder %s19, 3
      %p147 = scmp.ne.s32.totalorder %s142, %s144
      %p148 = scmp.eq.s32.totalorder %s19, 0
      %p149 = por %p147, %p148
      %p150 = scmp.ne.s32.totalorder %s142, %s144
      %p151 = scmp.eq.s32.totalorder %s24, 3
      %p152 = por %p150, %p151
      %p153 = scmp.ne.s32.totalorder %s144, %s145
      %p154 = scmp.eq.s32.totalorder %s24, 0
      %p155 = por %p153, %p154
      %p156 = scmp.ne.s32.totalorder %s144, %s145
      %p157 = scmp.eq.s32.totalorder %s25, 3
      %p158 = por %p156, %p157
      %p160 = scmp.ne.s32.totalorder %s145, %s159
      %p161 = scmp.eq.s32.totalorder %s25, 0
      %p162 = por %p160, %p161
      %s164 = sadd.s32 %s163, 1
      %p167 = scmp.eq.s32.totalorder %s19, 3
      %p168 = scmp.ne.s32.totalorder %s163, %s165
      %p169 = scmp.eq.s32.totalorder %s19, 0
      %p170 = por %p168, %p169
      %p171 = scmp.ne.s32.totalorder %s163, %s165
      %p172 = scmp.eq.s32.totalorder %s24, 3
      %p173 = por %p171, %p172
      %p174 = scmp.ne.s32.totalorder %s165, %s166
      %p175 = scmp.eq.s32.totalorder %s24, 0
      %p176 = por %p174, %p175
      %p177 = scmp.ne.s32.totalorder %s165, %s166
      %p178 = scmp.eq.s32.totalorder %s25, 3
      %p179 = por %p177, %p178
      %p181 = scmp.ne.s32.totalorder %s166, %s180
      %p182 = scmp.eq.s32.totalorder %s25, 0
      %p183 = por %p181, %p182
      %s185 = sadd.s32 %s184, 1
      %p188 = scmp.eq.s32.totalorder %s19, 3
      %p189 = scmp.ne.s32.totalorder %s184, %s186
      %p190 = scmp.eq.s32.totalorder %s19, 0
      %p191 = por %p189, %p190
      %p192 = scmp.ne.s32.totalorder %s184, %s186
      %p193 = scmp.eq.s32.totalorder %s24, 3
      %p194 = por %p192, %p193
      %p195 = scmp.ne.s32.totalorder %s186, %s187
      %p196 = scmp.eq.s32.totalorder %s24, 0
      %p197 = por %p195, %p196
      %p198 = scmp.ne.s32.totalorder %s186, %s187
      %p199 = scmp.eq.s32.totalorder %s25, 3
      %p200 = por %p198, %p199
      %p202 = scmp.ne.s32.totalorder %s187, %s201
      %p203 = scmp.eq.s32.totalorder %s25, 0
      %p204 = por %p202, %p203
      %s205 = ssub.s32 %s19, %s26
      %p206 = scmp.eq.s32.totalorder %s205, 0
      %s208 = sadd.s32 %s207, 1
      %s209 = scalar_select %p206, %s207, %s208
      %p212 = pneg %p206
      %p213 = scmp.eq.s32.totalorder %s19, 3
      %p214 = por %p212, %p213
      %p215 = scmp.ne.s32.totalorder %s207, %s210
      %p216 = scmp.eq.s32.totalorder %s19, 0
      %p217 = por %p215, %p216
      %p218 = scmp.ne.s32.totalorder %s207, %s210
      %p219 = scmp.eq.s32.totalorder %s24, 3
      %p220 = por %p218, %p219
      %p221 = scmp.ne.s32.totalorder %s210, %s211
      %p222 = scmp.eq.s32.totalorder %s24, 0
      %p223 = por %p221, %p222
      %p224 = scmp.ne.s32.totalorder %s210, %s211
      %p225 = scmp.eq.s32.totalorder %s25, 3
      %p226 = por %p224, %p225
      %p228 = scmp.ne.s32.totalorder %s211, %s227
      %p229 = scmp.eq.s32.totalorder %s25, 0
      %p230 = por %p228, %p229
      %p231 = scmp.le.s32.totalorder 1, %s19
      %p232 = scmp.lt.s32.totalorder %s19, 5
      %p233 = pnand %p231, %p232
      %p234 = pneg %p233
      // Predicated region
      $region9: #{tpu_custom_call.1} parent=5 // pred_check
        _
      $region10: #{tpu_custom_call.1} parent=5 // pred_check_branch
        %236 = sbr.rel (%p233) target = $region12
      $region11: #{tpu_custom_call.1} parent=5 // pred_region
        %s237 = ssub.s32 %s19, 1
        // Predicated region
        $region13: #{tpu_custom_call.1} parent=11 // pred_check
          %p238 = pneg %p92
        $region14: #{tpu_custom_call.1} parent=11 // pred_check_branch
          %240 = sbr.rel (%p238) target = $region16
        $region15: #{tpu_custom_call.1} parent=11 // pred_region
          _
        $region16: #{tpu_custom_call.1} parent=11 // pred_fallthru
          _
        // Predicated region
        $region17: #{tpu_custom_call.1} parent=11 // pred_check
          %p241 = pneg %p113
        $region18: #{tpu_custom_call.1} parent=11 // pred_check_branch
          %243 = sbr.rel (%p241) target = $region20
        $region19: #{tpu_custom_call.1} parent=11 // pred_region
          _
        $region20: #{tpu_custom_call.1} parent=11 // pred_fallthru
          _
        // Predicated region
        $region21: #{tpu_custom_call.1} parent=11 // pred_check
          %p244 = pneg %p134
        $region22: #{tpu_custom_call.1} parent=11 // pred_check_branch
          %246 = sbr.rel (%p244) target = $region24
        $region23: #{tpu_custom_call.1} parent=11 // pred_region
          %s248 = ssub.s32 768, 768
          %249 = vsyncadd [#allocation3], %s248
          %s250 = sshll.u32 [#allocation2], 4
          %s251 = int_to_ptr.vmem [resolvable:$true] %s250
          %256 = dma.hbm_to_vmem [thread:$0]  %s4, 768, %s251, [#allocation3], 128, 128, 8
        $region24: #{tpu_custom_call.1} parent=11 // pred_fallthru
          _
        // Predicated region
        $region25: #{tpu_custom_call.1} parent=11 // pred_check
          %p257 = pneg %p155
        $region26: #{tpu_custom_call.1} parent=11 // pred_check_branch
          %259 = sbr.rel (%p257) target = $region28
        $region27: #{tpu_custom_call.1} parent=11 // pred_region
          _
        $region28: #{tpu_custom_call.1} parent=11 // pred_fallthru
          _
        // Predicated region
        $region29: #{tpu_custom_call.1} parent=11 // pred_check
          %p260 = pneg %p176
        $region30: #{tpu_custom_call.1} parent=11 // pred_check_branch
          %262 = sbr.rel (%p260) target = $region32
        $region31: #{tpu_custom_call.1} parent=11 // pred_region
          %s264 = ssub.s32 1536, 1536
          %265 = vsyncadd [#allocation6], %s264
          %s266 = sshll.u32 [#allocation5], 4
          %s267 = int_to_ptr.vmem [resolvable:$true] %s266
          %272 = dma.hbm_to_vmem [thread:$0]  %s6, 1536, %s267, [#allocation6], 128, 128, 8
        $region32: #{tpu_custom_call.1} parent=11 // pred_fallthru
          _
        // Predicated region
        $region33: #{tpu_custom_call.1} parent=11 // pred_check
          %p273 = pneg %p197
        $region34: #{tpu_custom_call.1} parent=11 // pred_check_branch
          %275 = sbr.rel (%p273) target = $region36
        $region35: #{tpu_custom_call.1} parent=11 // pred_region
          _
        $region36: #{tpu_custom_call.1} parent=11 // pred_fallthru
          _
      $region12: #{tpu_custom_call.1} parent=5 // pred_fallthru
        _
      %p276 = scmp.lt.s32.totalorder %s19, 4
      // Predicated region
      $region37: #{tpu_custom_call.1} parent=5 // pred_check
        %p277 = pneg %p276
      $region38: #{tpu_custom_call.1} parent=5 // pred_check_branch
        %279 = sbr.rel (%p277) target = $region40
      $region39: #{tpu_custom_call.1} parent=5 // pred_region
        // Predicated region
        $region41: #{tpu_custom_call.1} parent=39 // pred_check
          %p280 = pneg %p39
        $region42: #{tpu_custom_call.1} parent=39 // pred_check_branch
          %282 = sbr.rel (%p280) target = $region44
        $region43: #{tpu_custom_call.1} parent=39 // pred_region
          %p283 = scmp.lt.s32.totalorder %s19, 3
          %s284 = scalar_select %p283, %s19, 3
          %s285 = smul.addr %s284, 2
          %s286 = smul.addr %s285, 8
          %s287 = scalar_lea.vmem %s0, %s286
        $region44: #{tpu_custom_call.1} parent=39 // pred_fallthru
          _
        // Predicated region
        $region45: #{tpu_custom_call.1} parent=39 // pred_check
          %p288 = pneg %p65
        $region46: #{tpu_custom_call.1} parent=39 // pred_check_branch
          %290 = sbr.rel (%p288) target = $region48
        $region47: #{tpu_custom_call.1} parent=39 // pred_region
          %p291 = scmp.lt.s32.totalorder %s19, 3
          %s292 = scalar_select %p291, %s19, 3
          %s293 = smul.addr %s292, 2
          %s294 = smul.addr %s293, 8
          %s295 = scalar_lea.vmem %s1, %s294
        $region48: #{tpu_custom_call.1} parent=39 // pred_fallthru
          _
      $region40: #{tpu_custom_call.1} parent=5 // pred_fallthru
        _
      %p296 = scmp.le.s32.totalorder 1, %s19
      %p297 = scmp.lt.s32.totalorder %s19, 5
      %p298 = pnand %p296, %p297
      %p299 = pneg %p298
      // Predicated region
      $region49: #{tpu_custom_call.1} parent=5 // pred_check
        _
      $region50: #{tpu_custom_call.1} parent=5 // pred_check_branch
        %301 = sbr.rel (%p298) target = $region52
      $region51: #{tpu_custom_call.1} parent=5 // pred_region
        %s302 = ssub.s32 %s19, 1
        // Predicated region
        $region53: #{tpu_custom_call.1} parent=51 // pred_check
          %p303 = pneg %p134
        $region54: #{tpu_custom_call.1} parent=51 // pred_check_branch
          %305 = sbr.rel (%p303) target = $region56
        $region55: #{tpu_custom_call.1} parent=51 // pred_region
          %306 = dma.done [#allocation3], 768
        $region56: #{tpu_custom_call.1} parent=51 // pred_fallthru
          _
        // Predicated region
        $region57: #{tpu_custom_call.1} parent=51 // pred_check
          %p307 = pneg %p176
        $region58: #{tpu_custom_call.1} parent=51 // pred_check_branch
          %309 = sbr.rel (%p307) target = $region60
        $region59: #{tpu_custom_call.1} parent=51 // pred_region
          %310 = dma.done [#allocation6], 1536
        $region60: #{tpu_custom_call.1} parent=51 // pred_fallthru
          _
        %p311 = scmp.lt.s32.totalorder %s24, 3
        %s312 = scalar_select %p311, %s24, 3
        %s313 = smul.addr %s312, 2
        %s314 = smul.addr %s313, 8
        %s315 = scalar_lea.vmem %s0, %s314
        %p316 = pneg %p45
        %p317 = pneg %p42
        %p318 = scmp.lt.s32.totalorder %s24, 3
        %s319 = scalar_select %p318, %s24, 3
        %s320 = smul.addr %s319, 2
        %s321 = smul.addr %s320, 8
        %s322 = scalar_lea.vmem %s1, %s321
        %p323 = pneg %p71
        %p324 = pneg %p68
        %p325 = pneg %p92
        %p326 = pneg %p89
        %p327 = pneg %p113
        %p328 = pneg %p110
        %p329 = pneg %p134
        %p330 = pneg %p131
        %p331 = pneg %p155
        %p332 = pneg %p152
        %p333 = pneg %p176
        %p334 = pneg %p173
        %p335 = pneg %p197
        %p336 = pneg %p194
        %p337 = pneg %p223
        %p338 = pneg %p220
        %s339 = sand.u32 %s210, 1
        %s340 = scalar_lea.sflag [#allocation4], %s339
        %s341 = sand.u32 %s210, 1
        %s342 = smul.addr %s341, 16
        %s343 = scalar_lea.vmem [#allocation7], %s342
        %p344 = scmp.lt.s32.totalorder %s24, 3
        %s345 = scalar_select %p344, %s24, 3
        %s346 = smul.addr %s345, 2
        %s347 = smul.addr %s346, 8
        %s348 = scalar_lea.vmem %s0, %s347
        %p349 = scmp.lt.s32.totalorder %s24, 3
        %s350 = scalar_select %p349, %s24, 3
        %s351 = smul.addr %s350, 2
        %s352 = smul.addr %s351, 8
        %s353 = scalar_lea.vmem %s1, %s352
        %v354 = vld [vmem:[%s348] sm:$0xff]
        %v355 = vld [vmem:[%s348 + $0x8] sm:$0xff]
        %v356 = vld [vmem:[%s353] sm:$0xff]
        %v357 = vld [vmem:[%s353 + $0x8] sm:$0xff]
        %v358 = vld [vmem:[%s2] sm:$0x7]
        %360 = vset.pattern.permute.xlu0 0
        %361 = vperm.xlu0 %360, %v356
        %v362 = vpop.permute.xlu0 %361
        %365 = vset.pattern.permute.xlu0 0
        %366 = vperm.xlu0 %365, %v357
        %v367 = vpop.permute.xlu0 %366
        %v369 = vlaneseq
        %v370 = vshrl.u32 %v369, 7
        %v371 = vsub.s32 0, %v370
        %v372 = vrot.slane %v358, %v371
        %v373 = vmul.f32 %v362, %v372
        %v374 = vmul.f32 %v367, %v372
        %v375 = vlaneseq
        %v376 = vshrl.u32 %v375, 7
        %v377 = vsub.s32 1, %v376
        %v378 = vrot.slane %v358, %v377
        %v379 = vmul.f32 %v362, %v378
        %v380 = vmul.f32 %v367, %v378
        %383 = vrot.lane.b32.xlu0 %v354, 112
        %v384 = vpop.permute.xlu0 %383
        %385 = vrot.lane.b32.xlu0 %v355, 112
        %v386 = vpop.permute.xlu0 %385
        %vm387 = vcmask 130048
        %v388 = vsel %vm387, %v384, 0
        %v390 = vsel %vm387, %v386, 0
        %392 = vmatprep.subr.mxu0 0.0
        %393 = vmatpush1.msra.mxu0 0.0
        %394 = vmatprep.subr.mxu0 0.0
        %395 = vmatpush1.msra.mxu0 0.0
        %396 = vmatprep.subr.mxu0 0.0
        %397 = vmatpush1.msra.mxu0 0.0
        %398 = vmatprep.subr.mxu0 0.0
        %399 = vmatpush1.msra.mxu0 0.0
        %400 = vmatprep.subr.mxu0 0.0
        %401 = vmatpush1.msra.mxu0 0.0
        %402 = vmatprep.subr.mxu0 0.0
        %403 = vmatpush1.msra.mxu0 0.0
        %404 = vmatprep.subr.mxu0 0.0
        %405 = vmatpush1.msra.mxu0 0.0
        %406 = vmatprep.subr.mxu0 0.0
        %407 = vmatpush1.msra.mxu0 0.0
        %408 = vmatprep.subr.mxu0 0.0
        %409 = vmatpush1.msra.mxu0 0.0
        %410 = vmatprep.subr.mxu0 0.0
        %411 = vmatpush1.msra.mxu0 0.0
        %412 = vmatprep.subr.mxu0 0.0
        %413 = vmatpush1.msra.mxu0 0.0
        %414 = vmatprep.subr.mxu0 0.0
        %415 = vmatpush1.msra.mxu0 0.0
        %416 = vmatprep.subr.mxu0 0.0
        %417 = vmatpush1.msra.mxu0 0.0
        %418 = vmatprep.subr.mxu0 0.0
        %419 = vmatpush1.msra.mxu0 0.0
        %420 = vmatprep.subr.mxu0 0.0
        %421 = vmatpush1.msra.mxu0 %v380
        %422 = vmatprep.subr.mxu0 0.0
        %423 = vmatpush1.msra.mxu0 %v379
        %424 = vmatprep.subr.mxu0 0.0
        %425 = vmatpush2.msra.mxu0 0.0
        %426 = vmatprep.subr.mxu0 0.0
        %427 = vmatpush2.msra.mxu0 0.0
        %428 = vmatprep.subr.mxu0 0.0
        %429 = vmatpush2.msra.mxu0 0.0
        %430 = vmatprep.subr.mxu0 0.0
        %431 = vmatpush2.msra.mxu0 0.0
        %432 = vmatprep.subr.mxu0 0.0
        %433 = vmatpush2.msra.mxu0 0.0
        %434 = vmatprep.subr.mxu0 0.0
        %435 = vmatpush2.msra.mxu0 0.0
        %436 = vmatprep.subr.mxu0 0.0
        %437 = vmatpush2.msra.mxu0 0.0
        %438 = vmatprep.subr.mxu0 0.0
        %439 = vmatpush2.msra.mxu0 0.0
        %440 = vmatprep.subr.mxu0 0.0
        %441 = vmatpush2.msra.mxu0 0.0
        %442 = vmatprep.subr.mxu0 0.0
        %443 = vmatpush2.msra.mxu0 0.0
        %444 = vmatprep.subr.mxu0 0.0
        %445 = vmatpush2.msra.mxu0 0.0
        %446 = vmatprep.subr.mxu0 0.0
        %447 = vmatpush2.msra.mxu0 0.0
        %448 = vmatprep.subr.mxu0 0.0
        %449 = vmatpush2.msra.mxu0 0.0
        %450 = vmatprep.subr.mxu0 0.0
        %451 = vmatpush2.msra.mxu0 0.0
        %452 = vmatprep.subr.mxu0 0.0
        %453 = vmatpush2.msra.mxu0 0.0
        %454 = vmatprep.subr.mxu0 0.0
        %455 = vmatpush2.msra.mxu0 0.0
        %456 = vmatprep.mubr.f32.mxu0 0.0
        %457 = vmatmul.mubr.f32.gmra.mxu0 %v388
        %v458 = vpop.f32.mrf.mxu0
        %v459 = vadd.f32 0.0, %v458
        %v460 = vpop.f32.mrf.mxu0
        %461 = vmatprep.mubr.f32.mxu0 0.0
        %462 = vmatmul.mubr.f32.gmra.mxu0 %v390
        %v463 = vpop.f32.mrf.mxu0
        %v464 = vadd.f32 0.0, %v463
        %v465 = vpop.f32.mrf.mxu0
        %466 = vdwg.mxu0
        %v467 = vsel %vm387, %v354, 0
        %v469 = vsel %vm387, %v355, 0
        %471 = vmatprep.subr.mxu0 0.0
        %472 = vmatpush1.msra.mxu0 0.0
        %473 = vmatprep.subr.mxu0 0.0
        %474 = vmatpush1.msra.mxu0 0.0
        %475 = vmatprep.subr.mxu0 0.0
        %476 = vmatpush1.msra.mxu0 0.0
        %477 = vmatprep.subr.mxu0 0.0
        %478 = vmatpush1.msra.mxu0 0.0
        %479 = vmatprep.subr.mxu0 0.0
        %480 = vmatpush1.msra.mxu0 0.0
        %481 = vmatprep.subr.mxu0 0.0
        %482 = vmatpush1.msra.mxu0 0.0
        %483 = vmatprep.subr.mxu0 0.0
        %484 = vmatpush1.msra.mxu0 0.0
        %485 = vmatprep.subr.mxu0 0.0
        %486 = vmatpush1.msra.mxu0 0.0
        %487 = vmatprep.subr.mxu0 0.0
        %488 = vmatpush1.msra.mxu0 0.0
        %489 = vmatprep.subr.mxu0 0.0
        %490 = vmatpush1.msra.mxu0 0.0
        %491 = vmatprep.subr.mxu0 0.0
        %492 = vmatpush1.msra.mxu0 0.0
        %493 = vmatprep.subr.mxu0 0.0
        %494 = vmatpush1.msra.mxu0 0.0
        %495 = vmatprep.subr.mxu0 0.0
        %496 = vmatpush1.msra.mxu0 0.0
        %497 = vmatprep.subr.mxu0 0.0
        %498 = vmatpush1.msra.mxu0 0.0
        %499 = vmatprep.subr.mxu0 0.0
        %500 = vmatpush1.msra.mxu0 %v374
        %501 = vmatprep.subr.mxu0 0.0
        %502 = vmatpush1.msra.mxu0 %v373
        %503 = vmatprep.subr.mxu0 0.0
        %504 = vmatpush2.msra.mxu0 0.0
        %505 = vmatprep.subr.mxu0 0.0
        %506 = vmatpush2.msra.mxu0 0.0
        %507 = vmatprep.subr.mxu0 0.0
        %508 = vmatpush2.msra.mxu0 0.0
        %509 = vmatprep.subr.mxu0 0.0
        %510 = vmatpush2.msra.mxu0 0.0
        %511 = vmatprep.subr.mxu0 0.0
        %512 = vmatpush2.msra.mxu0 0.0
        %513 = vmatprep.subr.mxu0 0.0
        %514 = vmatpush2.msra.mxu0 0.0
        %515 = vmatprep.subr.mxu0 0.0
        %516 = vmatpush2.msra.mxu0 0.0
        %517 = vmatprep.subr.mxu0 0.0
        %518 = vmatpush2.msra.mxu0 0.0
        %519 = vmatprep.subr.mxu0 0.0
        %520 = vmatpush2.msra.mxu0 0.0
        %521 = vmatprep.subr.mxu0 0.0
        %522 = vmatpush2.msra.mxu0 0.0
        %523 = vmatprep.subr.mxu0 0.0
        %524 = vmatpush2.msra.mxu0 0.0
        %525 = vmatprep.subr.mxu0 0.0
        %526 = vmatpush2.msra.mxu0 0.0
        %527 = vmatprep.subr.mxu0 0.0
        %528 = vmatpush2.msra.mxu0 0.0
        %529 = vmatprep.subr.mxu0 0.0
        %530 = vmatpush2.msra.mxu0 0.0
        %531 = vmatprep.subr.mxu0 0.0
        %532 = vmatpush2.msra.mxu0 0.0
        %533 = vmatprep.subr.mxu0 0.0
        %534 = vmatpush2.msra.mxu0 0.0
        %535 = vmatprep.mubr.f32.mxu0 0.0
        %536 = vmatmul.mubr.f32.gmra.mxu0 %v467
        %v537 = vpop.f32.mrf.mxu0
        %v538 = vadd.f32 %v459, %v537
        %v539 = vpop.f32.mrf.mxu0
        %540 = vmatprep.mubr.f32.mxu0 0.0
        %541 = vmatmul.mubr.f32.gmra.mxu0 %v469
        %v542 = vpop.f32.mrf.mxu0
        %v543 = vadd.f32 %v464, %v542
        %v544 = vpop.f32.mrf.mxu0
        %545 = vdwg.mxu0
        %v546 = vlaneseq
        %v547 = vshrl.u32 %v546, 7
        %v548 = vsub.s32 2, %v547
        %v549 = vrot.slane %v358, %v548
        %v550 = vmul.f32 %v362, %v549
        %v551 = vmul.f32 %v367, %v549
        %552 = vrot.lane.b32.xlu0 %v354, 96
        %v553 = vpop.permute.xlu0 %552
        %554 = vrot.lane.b32.xlu0 %v355, 96
        %v555 = vpop.permute.xlu0 %554
        %v556 = vsel %vm387, %v553, 0
        %v558 = vsel %vm387, %v555, 0
        %560 = vmatprep.subr.mxu0 0.0
        %561 = vmatpush1.msra.mxu0 0.0
        %562 = vmatprep.subr.mxu0 0.0
        %563 = vmatpush1.msra.mxu0 0.0
        %564 = vmatprep.subr.mxu0 0.0
        %565 = vmatpush1.msra.mxu0 0.0
        %566 = vmatprep.subr.mxu0 0.0
        %567 = vmatpush1.msra.mxu0 0.0
        %568 = vmatprep.subr.mxu0 0.0
        %569 = vmatpush1.msra.mxu0 0.0
        %570 = vmatprep.subr.mxu0 0.0
        %571 = vmatpush1.msra.mxu0 0.0
        %572 = vmatprep.subr.mxu0 0.0
        %573 = vmatpush1.msra.mxu0 0.0
        %574 = vmatprep.subr.mxu0 0.0
        %575 = vmatpush1.msra.mxu0 0.0
        %576 = vmatprep.subr.mxu0 0.0
        %577 = vmatpush1.msra.mxu0 0.0
        %578 = vmatprep.subr.mxu0 0.0
        %579 = vmatpush1.msra.mxu0 0.0
        %580 = vmatprep.subr.mxu0 0.0
        %581 = vmatpush1.msra.mxu0 0.0
        %582 = vmatprep.subr.mxu0 0.0
        %583 = vmatpush1.msra.mxu0 0.0
        %584 = vmatprep.subr.mxu0 0.0
        %585 = vmatpush1.msra.mxu0 0.0
        %586 = vmatprep.subr.mxu0 0.0
        %587 = vmatpush1.msra.mxu0 0.0
        %588 = vmatprep.subr.mxu0 0.0
        %589 = vmatpush1.msra.mxu0 %v551
        %590 = vmatprep.subr.mxu0 0.0
        %591 = vmatpush1.msra.mxu0 %v550
        %592 = vmatprep.subr.mxu0 0.0
        %593 = vmatpush2.msra.mxu0 0.0
        %594 = vmatprep.subr.mxu0 0.0
        %595 = vmatpush2.msra.mxu0 0.0
        %596 = vmatprep.subr.mxu0 0.0
        %597 = vmatpush2.msra.mxu0 0.0
        %598 = vmatprep.subr.mxu0 0.0
        %599 = vmatpush2.msra.mxu0 0.0
        %600 = vmatprep.subr.mxu0 0.0
        %601 = vmatpush2.msra.mxu0 0.0
        %602 = vmatprep.subr.mxu0 0.0
        %603 = vmatpush2.msra.mxu0 0.0
        %604 = vmatprep.subr.mxu0 0.0
        %605 = vmatpush2.msra.mxu0 0.0
        %606 = vmatprep.subr.mxu0 0.0
        %607 = vmatpush2.msra.mxu0 0.0
        %608 = vmatprep.subr.mxu0 0.0
        %609 = vmatpush2.msra.mxu0 0.0
        %610 = vmatprep.subr.mxu0 0.0
        %611 = vmatpush2.msra.mxu0 0.0
        %612 = vmatprep.subr.mxu0 0.0
        %613 = vmatpush2.msra.mxu0 0.0
        %614 = vmatprep.subr.mxu0 0.0
        %615 = vmatpush2.msra.mxu0 0.0
        %616 = vmatprep.subr.mxu0 0.0
        %617 = vmatpush2.msra.mxu0 0.0
        %618 = vmatprep.subr.mxu0 0.0
        %619 = vmatpush2.msra.mxu0 0.0
        %620 = vmatprep.subr.mxu0 0.0
        %621 = vmatpush2.msra.mxu0 0.0
        %622 = vmatprep.subr.mxu0 0.0
        %623 = vmatpush2.msra.mxu0 0.0
        %624 = vmatprep.mubr.f32.mxu0 0.0
        %625 = vmatmul.mubr.f32.gmra.mxu0 %v556
        %v626 = vpop.f32.mrf.mxu0
        %v627 = vadd.f32 0.0, %v626
        %v628 = vpop.f32.mrf.mxu0
        %629 = vmatprep.mubr.f32.mxu0 0.0
        %630 = vmatmul.mubr.f32.gmra.mxu0 %v558
        %v631 = vpop.f32.mrf.mxu0
        %v632 = vadd.f32 0.0, %v631
        %v633 = vpop.f32.mrf.mxu0
        %634 = vdwg.mxu0
        %v635 = vadd.f32 %v538, %v627
        %v636 = vadd.f32 %v543, %v632
        %v637 = vld [vmem:[%s3] sm:$0x1]
        %v639 = vlaneseq
        %v640 = vshrl.u32 %v639, 7
        %v641 = vsub.s32 0, %v640
        %v642 = vrot.slane %v637, %v641
        %v644 = vadd.f32 %v635, %v642
        %v645 = vadd.f32 %v636, %v642
        %v646 = vmax.f32 %v644, 0.0
        %v647 = vmax.f32 %v645, 0.0
        %v648 = vld [vmem:[#allocation2] sm:$0xff]
        %v649 = vld [vmem:[#allocation2 + $0x8] sm:$0xff]
        %v651 = vsel %vm387, %v646, 0
        %v654 = vsel %vm387, %v647, 0
        %656 = vmatprep.subr.mxu0 0.0
        %657 = vmatpush1.msra.mxu0 0.0
        %658 = vmatprep.subr.mxu0 0.0
        %659 = vmatpush1.msra.mxu0 0.0
        %660 = vmatprep.subr.mxu0 0.0
        %661 = vmatpush1.msra.mxu0 0.0
        %662 = vmatprep.subr.mxu0 0.0
        %663 = vmatpush1.msra.mxu0 0.0
        %664 = vmatprep.subr.mxu0 0.0
        %665 = vmatpush1.msra.mxu0 0.0
        %666 = vmatprep.subr.mxu0 0.0
        %667 = vmatpush1.msra.mxu0 0.0
        %668 = vmatprep.subr.mxu0 0.0
        %669 = vmatpush1.msra.mxu0 0.0
        %670 = vmatprep.subr.mxu0 0.0
        %671 = vmatpush1.msra.mxu0 0.0
        %672 = vmatprep.subr.mxu0 0.0
        %673 = vmatpush1.msra.mxu0 0.0
        %674 = vmatprep.subr.mxu0 0.0
        %675 = vmatpush1.msra.mxu0 0.0
        %676 = vmatprep.subr.mxu0 0.0
        %677 = vmatpush1.msra.mxu0 0.0
        %678 = vmatprep.subr.mxu0 0.0
        %679 = vmatpush1.msra.mxu0 0.0
        %680 = vmatprep.subr.mxu0 0.0
        %681 = vmatpush1.msra.mxu0 0.0
        %682 = vmatprep.subr.mxu0 0.0
        %683 = vmatpush1.msra.mxu0 0.0
        %684 = vmatprep.subr.mxu0 0.0
        %685 = vmatpush1.msra.mxu0 %v649
        %686 = vmatprep.subr.mxu0 0.0
        %687 = vmatpush1.msra.mxu0 %v648
        %688 = vmatprep.subr.mxu0 0.0
        %689 = vmatpush2.msra.mxu0 0.0
        %690 = vmatprep.subr.mxu0 0.0
        %691 = vmatpush2.msra.mxu0 0.0
        %692 = vmatprep.subr.mxu0 0.0
        %693 = vmatpush2.msra.mxu0 0.0
        %694 = vmatprep.subr.mxu0 0.0
        %695 = vmatpush2.msra.mxu0 0.0
        %696 = vmatprep.subr.mxu0 0.0
        %697 = vmatpush2.msra.mxu0 0.0
        %698 = vmatprep.subr.mxu0 0.0
        %699 = vmatpush2.msra.mxu0 0.0
        %700 = vmatprep.subr.mxu0 0.0
        %701 = vmatpush2.msra.mxu0 0.0
        %702 = vmatprep.subr.mxu0 0.0
        %703 = vmatpush2.msra.mxu0 0.0
        %704 = vmatprep.subr.mxu0 0.0
        %705 = vmatpush2.msra.mxu0 0.0
        %706 = vmatprep.subr.mxu0 0.0
        %707 = vmatpush2.msra.mxu0 0.0
        %708 = vmatprep.subr.mxu0 0.0
        %709 = vmatpush2.msra.mxu0 0.0
        %710 = vmatprep.subr.mxu0 0.0
        %711 = vmatpush2.msra.mxu0 0.0
        %712 = vmatprep.subr.mxu0 0.0
        %713 = vmatpush2.msra.mxu0 0.0
        %714 = vmatprep.subr.mxu0 0.0
        %715 = vmatpush2.msra.mxu0 0.0
        %716 = vmatprep.subr.mxu0 0.0
        %717 = vmatpush2.msra.mxu0 0.0
        %718 = vmatprep.subr.mxu0 0.0
        %719 = vmatpush2.msra.mxu0 0.0
        %720 = vmatprep.mubr.f32.mxu0 0.0
        %721 = vmatmul.mubr.f32.gmra.mxu0 %v651
        %v722 = vpop.f32.mrf.mxu0
        %v723 = vadd.f32 0.0, %v722
        %v724 = vpop.f32.mrf.mxu0
        %725 = vmatprep.mubr.f32.mxu0 0.0
        %726 = vmatmul.mubr.f32.gmra.mxu0 %v654
        %v727 = vpop.f32.mrf.mxu0
        %v728 = vadd.f32 0.0, %v727
        %v729 = vpop.f32.mrf.mxu0
        %730 = vdwg.mxu0
        %s731 = scalar_lea.vmem [#allocation2], 16
        %v732 = vld [vmem:[%s731] sm:$0xff]
        %v733 = vld [vmem:[%s731 + $0x8] sm:$0xff]
        %734 = vmatprep.subr.mxu0 0.0
        %735 = vmatpush1.msra.mxu0 0.0
        %736 = vmatprep.subr.mxu0 0.0
        %737 = vmatpush1.msra.mxu0 0.0
        %738 = vmatprep.subr.mxu0 0.0
        %739 = vmatpush1.msra.mxu0 0.0
        %740 = vmatprep.subr.mxu0 0.0
        %741 = vmatpush1.msra.mxu0 0.0
        %742 = vmatprep.subr.mxu0 0.0
        %743 = vmatpush1.msra.mxu0 0.0
        %744 = vmatprep.subr.mxu0 0.0
        %745 = vmatpush1.msra.mxu0 0.0
        %746 = vmatprep.subr.mxu0 0.0
        %747 = vmatpush1.msra.mxu0 0.0
        %748 = vmatprep.subr.mxu0 0.0
        %749 = vmatpush1.msra.mxu0 0.0
        %750 = vmatprep.subr.mxu0 0.0
        %751 = vmatpush1.msra.mxu0 0.0
        %752 = vmatprep.subr.mxu0 0.0
        %753 = vmatpush1.msra.mxu0 0.0
        %754 = vmatprep.subr.mxu0 0.0
        %755 = vmatpush1.msra.mxu0 0.0
        %756 = vmatprep.subr.mxu0 0.0
        %757 = vmatpush1.msra.mxu0 0.0
        %758 = vmatprep.subr.mxu0 0.0
        %759 = vmatpush1.msra.mxu0 0.0
        %760 = vmatprep.subr.mxu0 0.0
        %761 = vmatpush1.msra.mxu0 0.0
        %762 = vmatprep.subr.mxu0 0.0
        %763 = vmatpush1.msra.mxu0 %v733
        %764 = vmatprep.subr.mxu0 0.0
        %765 = vmatpush1.msra.mxu0 %v732
        %766 = vmatprep.subr.mxu0 0.0
        %767 = vmatpush2.msra.mxu0 0.0
        %768 = vmatprep.subr.mxu0 0.0
        %769 = vmatpush2.msra.mxu0 0.0
        %770 = vmatprep.subr.mxu0 0.0
        %771 = vmatpush2.msra.mxu0 0.0
        %772 = vmatprep.subr.mxu0 0.0
        %773 = vmatpush2.msra.mxu0 0.0
        %774 = vmatprep.subr.mxu0 0.0
        %775 = vmatpush2.msra.mxu0 0.0
        %776 = vmatprep.subr.mxu0 0.0
        %777 = vmatpush2.msra.mxu0 0.0
        %778 = vmatprep.subr.mxu0 0.0
        %779 = vmatpush2.msra.mxu0 0.0
        %780 = vmatprep.subr.mxu0 0.0
        %781 = vmatpush2.msra.mxu0 0.0
        %782 = vmatprep.subr.mxu0 0.0
        %783 = vmatpush2.msra.mxu0 0.0
        %784 = vmatprep.subr.mxu0 0.0
        %785 = vmatpush2.msra.mxu0 0.0
        %786 = vmatprep.subr.mxu0 0.0
        %787 = vmatpush2.msra.mxu0 0.0
        %788 = vmatprep.subr.mxu0 0.0
        %789 = vmatpush2.msra.mxu0 0.0
        %790 = vmatprep.subr.mxu0 0.0
        %791 = vmatpush2.msra.mxu0 0.0
        %792 = vmatprep.subr.mxu0 0.0
        %793 = vmatpush2.msra.mxu0 0.0
        %794 = vmatprep.subr.mxu0 0.0
        %795 = vmatpush2.msra.mxu0 0.0
        %796 = vmatprep.subr.mxu0 0.0
        %797 = vmatpush2.msra.mxu0 0.0
        %798 = vmatprep.mubr.f32.mxu0 0.0
        %799 = vmatmul.mubr.f32.gmra.mxu0 %v651
        %v800 = vpop.f32.mrf.mxu0
        %v801 = vadd.f32 0.0, %v800
        %v802 = vpop.f32.mrf.mxu0
        %803 = vmatprep.mubr.f32.mxu0 0.0
        %804 = vmatmul.mubr.f32.gmra.mxu0 %v654
        %v805 = vpop.f32.mrf.mxu0
        %v806 = vadd.f32 0.0, %v805
        %v807 = vpop.f32.mrf.mxu0
        %808 = vdwg.mxu0
        %809 = vmatprep.subr.mxu0 0.0
        %810 = vmatpush1.msra.mxu0 0.0
        %811 = vmatprep.subr.mxu0 0.0
        %812 = vmatpush1.msra.mxu0 0.0
        %813 = vmatprep.subr.mxu0 0.0
        %814 = vmatpush1.msra.mxu0 0.0
        %815 = vmatprep.subr.mxu0 0.0
        %816 = vmatpush1.msra.mxu0 0.0
        %817 = vmatprep.subr.mxu0 0.0
        %818 = vmatpush1.msra.mxu0 0.0
        %819 = vmatprep.subr.mxu0 0.0
        %820 = vmatpush1.msra.mxu0 0.0
        %821 = vmatprep.subr.mxu0 0.0
        %822 = vmatpush1.msra.mxu0 0.0
        %823 = vmatprep.subr.mxu0 0.0
        %824 = vmatpush1.msra.mxu0 0.0
        %825 = vmatprep.subr.mxu0 0.0
        %826 = vmatpush1.msra.mxu0 0.0
        %827 = vmatprep.subr.mxu0 0.0
        %828 = vmatpush1.msra.mxu0 0.0
        %829 = vmatprep.subr.mxu0 0.0
        %830 = vmatpush1.msra.mxu0 0.0
        %831 = vmatprep.subr.mxu0 0.0
        %832 = vmatpush1.msra.mxu0 0.0
        %833 = vmatprep.subr.mxu0 0.0
        %834 = vmatpush1.msra.mxu0 0.0
        %835 = vmatprep.subr.mxu0 0.0
        %836 = vmatpush1.msra.mxu0 0.0
        %837 = vmatprep.subr.mxu0 0.0
        %838 = vmatpush1.msra.mxu0 %v806
        %839 = vmatprep.subr.mxu0 0.0
        %840 = vmatpush1.msra.mxu0 %v801
        %841 = vmatprep.subr.mxu0 0.0
        %842 = vmatpush2.msra.mxu0 0.0
        %843 = vmatprep.subr.mxu0 0.0
        %844 = vmatpush2.msra.mxu0 0.0
        %845 = vmatprep.subr.mxu0 0.0
        %846 = vmatpush2.msra.mxu0 0.0
        %847 = vmatprep.subr.mxu0 0.0
        %848 = vmatpush2.msra.mxu0 0.0
        %849 = vmatprep.subr.mxu0 0.0
        %850 = vmatpush2.msra.mxu0 0.0
        %851 = vmatprep.subr.mxu0 0.0
        %852 = vmatpush2.msra.mxu0 0.0
        %853 = vmatprep.subr.mxu0 0.0
        %854 = vmatpush2.msra.mxu0 0.0
        %855 = vmatprep.subr.mxu0 0.0
        %856 = vmatpush2.msra.mxu0 0.0
        %857 = vmatprep.subr.mxu0 0.0
        %858 = vmatpush2.msra.mxu0 0.0
        %859 = vmatprep.subr.mxu0 0.0
        %860 = vmatpush2.msra.mxu0 0.0
        %861 = vmatprep.subr.mxu0 0.0
        %862 = vmatpush2.msra.mxu0 0.0
        %863 = vmatprep.subr.mxu0 0.0
        %864 = vmatpush2.msra.mxu0 0.0
        %865 = vmatprep.subr.mxu0 0.0
        %866 = vmatpush2.msra.mxu0 0.0
        %867 = vmatprep.subr.mxu0 0.0
        %868 = vmatpush2.msra.mxu0 0.0
        %869 = vmatprep.subr.mxu0 0.0
        %870 = vmatpush2.msra.mxu0 0.0
        %871 = vmatprep.subr.mxu0 0.0
        %872 = vmatpush2.msra.mxu0 0.0
        %873 = vmatprep.mubr.f32.mxu0 0.0
        %874 = vmatmul.mubr.f32.gmra.mxu0 %v388
        %v875 = vpop.f32.mrf.mxu0
        %v876 = vadd.f32 0.0, %v875
        %v877 = vpop.f32.mrf.mxu0
        %878 = vmatprep.mubr.f32.mxu0 0.0
        %879 = vmatmul.mubr.f32.gmra.mxu0 %v390
        %v880 = vpop.f32.mrf.mxu0
        %v881 = vadd.f32 0.0, %v880
        %v882 = vpop.f32.mrf.mxu0
        %883 = vdwg.mxu0
        %884 = vmatprep.subr.mxu0 0.0
        %885 = vmatpush1.msra.mxu0 0.0
        %886 = vmatprep.subr.mxu0 0.0
        %887 = vmatpush1.msra.mxu0 0.0
        %888 = vmatprep.subr.mxu0 0.0
        %889 = vmatpush1.msra.mxu0 0.0
        %890 = vmatprep.subr.mxu0 0.0
        %891 = vmatpush1.msra.mxu0 0.0
        %892 = vmatprep.subr.mxu0 0.0
        %893 = vmatpush1.msra.mxu0 0.0
        %894 = vmatprep.subr.mxu0 0.0
        %895 = vmatpush1.msra.mxu0 0.0
        %896 = vmatprep.subr.mxu0 0.0
        %897 = vmatpush1.msra.mxu0 0.0
        %898 = vmatprep.subr.mxu0 0.0
        %899 = vmatpush1.msra.mxu0 0.0
        %900 = vmatprep.subr.mxu0 0.0
        %901 = vmatpush1.msra.mxu0 0.0
        %902 = vmatprep.subr.mxu0 0.0
        %903 = vmatpush1.msra.mxu0 0.0
        %904 = vmatprep.subr.mxu0 0.0
        %905 = vmatpush1.msra.mxu0 0.0
        %906 = vmatprep.subr.mxu0 0.0
        %907 = vmatpush1.msra.mxu0 0.0
        %908 = vmatprep.subr.mxu0 0.0
        %909 = vmatpush1.msra.mxu0 0.0
        %910 = vmatprep.subr.mxu0 0.0
        %911 = vmatpush1.msra.mxu0 0.0
        %912 = vmatprep.subr.mxu0 0.0
        %913 = vmatpush1.msra.mxu0 %v728
        %914 = vmatprep.subr.mxu0 0.0
        %915 = vmatpush1.msra.mxu0 %v723
        %916 = vmatprep.subr.mxu0 0.0
        %917 = vmatpush2.msra.mxu0 0.0
        %918 = vmatprep.subr.mxu0 0.0
        %919 = vmatpush2.msra.mxu0 0.0
        %920 = vmatprep.subr.mxu0 0.0
        %921 = vmatpush2.msra.mxu0 0.0
        %922 = vmatprep.subr.mxu0 0.0
        %923 = vmatpush2.msra.mxu0 0.0
        %924 = vmatprep.subr.mxu0 0.0
        %925 = vmatpush2.msra.mxu0 0.0
        %926 = vmatprep.subr.mxu0 0.0
        %927 = vmatpush2.msra.mxu0 0.0
        %928 = vmatprep.subr.mxu0 0.0
        %929 = vmatpush2.msra.mxu0 0.0
        %930 = vmatprep.subr.mxu0 0.0
        %931 = vmatpush2.msra.mxu0 0.0
        %932 = vmatprep.subr.mxu0 0.0
        %933 = vmatpush2.msra.mxu0 0.0
        %934 = vmatprep.subr.mxu0 0.0
        %935 = vmatpush2.msra.mxu0 0.0
        %936 = vmatprep.subr.mxu0 0.0
        %937 = vmatpush2.msra.mxu0 0.0
        %938 = vmatprep.subr.mxu0 0.0
        %939 = vmatpush2.msra.mxu0 0.0
        %940 = vmatprep.subr.mxu0 0.0
        %941 = vmatpush2.msra.mxu0 0.0
        %942 = vmatprep.subr.mxu0 0.0
        %943 = vmatpush2.msra.mxu0 0.0
        %944 = vmatprep.subr.mxu0 0.0
        %945 = vmatpush2.msra.mxu0 0.0
        %946 = vmatprep.subr.mxu0 0.0
        %947 = vmatpush2.msra.mxu0 0.0
        %948 = vmatprep.mubr.f32.mxu0 0.0
        %949 = vmatmul.mubr.f32.gmra.mxu0 %v467
        %v950 = vpop.f32.mrf.mxu0
        %v951 = vadd.f32 %v876, %v950
        %v952 = vpop.f32.mrf.mxu0
        %953 = vmatprep.mubr.f32.mxu0 0.0
        %954 = vmatmul.mubr.f32.gmra.mxu0 %v469
        %v955 = vpop.f32.mrf.mxu0
        %v956 = vadd.f32 %v881, %v955
        %v957 = vpop.f32.mrf.mxu0
        %958 = vdwg.mxu0
        %s959 = scalar_lea.vmem [#allocation2], 32
        %v960 = vld [vmem:[%s959] sm:$0xff]
        %v961 = vld [vmem:[%s959 + $0x8] sm:$0xff]
        %962 = vmatprep.subr.mxu0 0.0
        %963 = vmatpush1.msra.mxu0 0.0
        %964 = vmatprep.subr.mxu0 0.0
        %965 = vmatpush1.msra.mxu0 0.0
        %966 = vmatprep.subr.mxu0 0.0
        %967 = vmatpush1.msra.mxu0 0.0
        %968 = vmatprep.subr.mxu0 0.0
        %969 = vmatpush1.msra.mxu0 0.0
        %970 = vmatprep.subr.mxu0 0.0
        %971 = vmatpush1.msra.mxu0 0.0
        %972 = vmatprep.subr.mxu0 0.0
        %973 = vmatpush1.msra.mxu0 0.0
        %974 = vmatprep.subr.mxu0 0.0
        %975 = vmatpush1.msra.mxu0 0.0
        %976 = vmatprep.subr.mxu0 0.0
        %977 = vmatpush1.msra.mxu0 0.0
        %978 = vmatprep.subr.mxu0 0.0
        %979 = vmatpush1.msra.mxu0 0.0
        %980 = vmatprep.subr.mxu0 0.0
        %981 = vmatpush1.msra.mxu0 0.0
        %982 = vmatprep.subr.mxu0 0.0
        %983 = vmatpush1.msra.mxu0 0.0
        %984 = vmatprep.subr.mxu0 0.0
        %985 = vmatpush1.msra.mxu0 0.0
        %986 = vmatprep.subr.mxu0 0.0
        %987 = vmatpush1.msra.mxu0 0.0
        %988 = vmatprep.subr.mxu0 0.0
        %989 = vmatpush1.msra.mxu0 0.0
        %990 = vmatprep.subr.mxu0 0.0
        %991 = vmatpush1.msra.mxu0 %v961
        %992 = vmatprep.subr.mxu0 0.0
        %993 = vmatpush1.msra.mxu0 %v960
        %994 = vmatprep.subr.mxu0 0.0
        %995 = vmatpush2.msra.mxu0 0.0
        %996 = vmatprep.subr.mxu0 0.0
        %997 = vmatpush2.msra.mxu0 0.0
        %998 = vmatprep.subr.mxu0 0.0
        %999 = vmatpush2.msra.mxu0 0.0
        %1000 = vmatprep.subr.mxu0 0.0
        %1001 = vmatpush2.msra.mxu0 0.0
        %1002 = vmatprep.subr.mxu0 0.0
        %1003 = vmatpush2.msra.mxu0 0.0
        %1004 = vmatprep.subr.mxu0 0.0
        %1005 = vmatpush2.msra.mxu0 0.0
        %1006 = vmatprep.subr.mxu0 0.0
        %1007 = vmatpush2.msra.mxu0 0.0
        %1008 = vmatprep.subr.mxu0 0.0
        %1009 = vmatpush2.msra.mxu0 0.0
        %1010 = vmatprep.subr.mxu0 0.0
        %1011 = vmatpush2.msra.mxu0 0.0
        %1012 = vmatprep.subr.mxu0 0.0
        %1013 = vmatpush2.msra.mxu0 0.0
        %1014 = vmatprep.subr.mxu0 0.0
        %1015 = vmatpush2.msra.mxu0 0.0
        %1016 = vmatprep.subr.mxu0 0.0
        %1017 = vmatpush2.msra.mxu0 0.0
        %1018 = vmatprep.subr.mxu0 0.0
        %1019 = vmatpush2.msra.mxu0 0.0
        %1020 = vmatprep.subr.mxu0 0.0
        %1021 = vmatpush2.msra.mxu0 0.0
        %1022 = vmatprep.subr.mxu0 0.0
        %1023 = vmatpush2.msra.mxu0 0.0
        %1024 = vmatprep.subr.mxu0 0.0
        %1025 = vmatpush2.msra.mxu0 0.0
        %1026 = vmatprep.mubr.f32.mxu0 0.0
        %1027 = vmatmul.mubr.f32.gmra.mxu0 %v651
        %v1028 = vpop.f32.mrf.mxu0
        %v1029 = vadd.f32 0.0, %v1028
        %v1030 = vpop.f32.mrf.mxu0
        %1031 = vmatprep.mubr.f32.mxu0 0.0
        %1032 = vmatmul.mubr.f32.gmra.mxu0 %v654
        %v1033 = vpop.f32.mrf.mxu0
        %v1034 = vadd.f32 0.0, %v1033
        %v1035 = vpop.f32.mrf.mxu0
        %1036 = vdwg.mxu0
        %1037 = vmatprep.subr.mxu0 0.0
        %1038 = vmatpush1.msra.mxu0 0.0
        %1039 = vmatprep.subr.mxu0 0.0
        %1040 = vmatpush1.msra.mxu0 0.0
        %1041 = vmatprep.subr.mxu0 0.0
        %1042 = vmatpush1.msra.mxu0 0.0
        %1043 = vmatprep.subr.mxu0 0.0
        %1044 = vmatpush1.msra.mxu0 0.0
        %1045 = vmatprep.subr.mxu0 0.0
        %1046 = vmatpush1.msra.mxu0 0.0
        %1047 = vmatprep.subr.mxu0 0.0
        %1048 = vmatpush1.msra.mxu0 0.0
        %1049 = vmatprep.subr.mxu0 0.0
        %1050 = vmatpush1.msra.mxu0 0.0
        %1051 = vmatprep.subr.mxu0 0.0
        %1052 = vmatpush1.msra.mxu0 0.0
        %1053 = vmatprep.subr.mxu0 0.0
        %1054 = vmatpush1.msra.mxu0 0.0
        %1055 = vmatprep.subr.mxu0 0.0
        %1056 = vmatpush1.msra.mxu0 0.0
        %1057 = vmatprep.subr.mxu0 0.0
        %1058 = vmatpush1.msra.mxu0 0.0
        %1059 = vmatprep.subr.mxu0 0.0
        %1060 = vmatpush1.msra.mxu0 0.0
        %1061 = vmatprep.subr.mxu0 0.0
        %1062 = vmatpush1.msra.mxu0 0.0
        %1063 = vmatprep.subr.mxu0 0.0
        %1064 = vmatpush1.msra.mxu0 0.0
        %1065 = vmatprep.subr.mxu0 0.0
        %1066 = vmatpush1.msra.mxu0 %v1034
        %1067 = vmatprep.subr.mxu0 0.0
        %1068 = vmatpush1.msra.mxu0 %v1029
        %1069 = vmatprep.subr.mxu0 0.0
        %1070 = vmatpush2.msra.mxu0 0.0
        %1071 = vmatprep.subr.mxu0 0.0
        %1072 = vmatpush2.msra.mxu0 0.0
        %1073 = vmatprep.subr.mxu0 0.0
        %1074 = vmatpush2.msra.mxu0 0.0
        %1075 = vmatprep.subr.mxu0 0.0
        %1076 = vmatpush2.msra.mxu0 0.0
        %1077 = vmatprep.subr.mxu0 0.0
        %1078 = vmatpush2.msra.mxu0 0.0
        %1079 = vmatprep.subr.mxu0 0.0
        %1080 = vmatpush2.msra.mxu0 0.0
        %1081 = vmatprep.subr.mxu0 0.0
        %1082 = vmatpush2.msra.mxu0 0.0
        %1083 = vmatprep.subr.mxu0 0.0
        %1084 = vmatpush2.msra.mxu0 0.0
        %1085 = vmatprep.subr.mxu0 0.0
        %1086 = vmatpush2.msra.mxu0 0.0
        %1087 = vmatprep.subr.mxu0 0.0
        %1088 = vmatpush2.msra.mxu0 0.0
        %1089 = vmatprep.subr.mxu0 0.0
        %1090 = vmatpush2.msra.mxu0 0.0
        %1091 = vmatprep.subr.mxu0 0.0
        %1092 = vmatpush2.msra.mxu0 0.0
        %1093 = vmatprep.subr.mxu0 0.0
        %1094 = vmatpush2.msra.mxu0 0.0
        %1095 = vmatprep.subr.mxu0 0.0
        %1096 = vmatpush2.msra.mxu0 0.0
        %1097 = vmatprep.subr.mxu0 0.0
        %1098 = vmatpush2.msra.mxu0 0.0
        %1099 = vmatprep.subr.mxu0 0.0
        %1100 = vmatpush2.msra.mxu0 0.0
        %1101 = vmatprep.mubr.f32.mxu0 0.0
        %1102 = vmatmul.mubr.f32.gmra.mxu0 %v556
        %v1103 = vpop.f32.mrf.mxu0
        %v1104 = vadd.f32 0.0, %v1103
        %v1105 = vpop.f32.mrf.mxu0
        %1106 = vmatprep.mubr.f32.mxu0 0.0
        %1107 = vmatmul.mubr.f32.gmra.mxu0 %v558
        %v1108 = vpop.f32.mrf.mxu0
        %v1109 = vadd.f32 0.0, %v1108
        %v1110 = vpop.f32.mrf.mxu0
        %1111 = vdwg.mxu0
        %v1112 = vadd.f32 %v951, %v1104
        %v1113 = vadd.f32 %v956, %v1109
        %v1114 = vld [vmem:[%s5] sm:$0x1]
        %v1116 = vlaneseq
        %v1117 = vshrl.u32 %v1116, 7
        %v1118 = vsub.s32 0, %v1117
        %v1119 = vrot.slane %v1114, %v1118
        %v1121 = vadd.f32 %v1112, %v1119
        %v1122 = vadd.f32 %v1113, %v1119
        %v1123 = vmax.f32 %v1121, 0.0
        %v1124 = vmax.f32 %v1122, 0.0
        %v1125 = vld [vmem:[#allocation5] sm:$0xff]
        %v1126 = vld [vmem:[#allocation5 + $0x8] sm:$0xff]
        %v1127 = vld [vmem:[#allocation5 + $0x10] sm:$0xff]
        %v1128 = vld [vmem:[#allocation5 + $0x18] sm:$0xff]
        %vm1129 = vcmask 261120
        %v1131 = vsel %vm1129, %v1123, 0
        %v1134 = vsel %vm1129, %v1124, 0
        %1136 = vmatprep.subr.mxu0 0.0
        %1137 = vmatpush1.msra.mxu0 0.0
        %1138 = vmatprep.subr.mxu0 0.0
        %1139 = vmatpush1.msra.mxu0 0.0
        %1140 = vmatprep.subr.mxu0 0.0
        %1141 = vmatpush1.msra.mxu0 0.0
        %1142 = vmatprep.subr.mxu0 0.0
        %1143 = vmatpush1.msra.mxu0 0.0
        %1144 = vmatprep.subr.mxu0 0.0
        %1145 = vmatpush1.msra.mxu0 0.0
        %1146 = vmatprep.subr.mxu0 0.0
        %1147 = vmatpush1.msra.mxu0 0.0
        %1148 = vmatprep.subr.mxu0 0.0
        %1149 = vmatpush1.msra.mxu0 0.0
        %1150 = vmatprep.subr.mxu0 0.0
        %1151 = vmatpush1.msra.mxu0 0.0
        %1152 = vmatprep.subr.mxu0 0.0
        %1153 = vmatpush1.msra.mxu0 0.0
        %1154 = vmatprep.subr.mxu0 0.0
        %1155 = vmatpush1.msra.mxu0 0.0
        %1156 = vmatprep.subr.mxu0 0.0
        %1157 = vmatpush1.msra.mxu0 0.0
        %1158 = vmatprep.subr.mxu0 0.0
        %1159 = vmatpush1.msra.mxu0 0.0
        %1160 = vmatprep.subr.mxu0 0.0
        %1161 = vmatpush1.msra.mxu0 %v1128
        %1162 = vmatprep.subr.mxu0 0.0
        %1163 = vmatpush1.msra.mxu0 %v1127
        %1164 = vmatprep.subr.mxu0 0.0
        %1165 = vmatpush1.msra.mxu0 %v1126
        %1166 = vmatprep.subr.mxu0 0.0
        %1167 = vmatpush1.msra.mxu0 %v1125
        %1168 = vmatprep.subr.mxu0 0.0
        %1169 = vmatpush2.msra.mxu0 0.0
        %1170 = vmatprep.subr.mxu0 0.0
        %1171 = vmatpush2.msra.mxu0 0.0
        %1172 = vmatprep.subr.mxu0 0.0
        %1173 = vmatpush2.msra.mxu0 0.0
        %1174 = vmatprep.subr.mxu0 0.0
        %1175 = vmatpush2.msra.mxu0 0.0
        %1176 = vmatprep.subr.mxu0 0.0
        %1177 = vmatpush2.msra.mxu0 0.0
        %1178 = vmatprep.subr.mxu0 0.0
        %1179 = vmatpush2.msra.mxu0 0.0
        %1180 = vmatprep.subr.mxu0 0.0
        %1181 = vmatpush2.msra.mxu0 0.0
        %1182 = vmatprep.subr.mxu0 0.0
        %1183 = vmatpush2.msra.mxu0 0.0
        %1184 = vmatprep.subr.mxu0 0.0
        %1185 = vmatpush2.msra.mxu0 0.0
        %1186 = vmatprep.subr.mxu0 0.0
        %1187 = vmatpush2.msra.mxu0 0.0
        %1188 = vmatprep.subr.mxu0 0.0
        %1189 = vmatpush2.msra.mxu0 0.0
        %1190 = vmatprep.subr.mxu0 0.0
        %1191 = vmatpush2.msra.mxu0 0.0
        %1192 = vmatprep.subr.mxu0 0.0
        %1193 = vmatpush2.msra.mxu0 0.0
        %1194 = vmatprep.subr.mxu0 0.0
        %1195 = vmatpush2.msra.mxu0 0.0
        %1196 = vmatprep.subr.mxu0 0.0
        %1197 = vmatpush2.msra.mxu0 0.0
        %1198 = vmatprep.subr.mxu0 0.0
        %1199 = vmatpush2.msra.mxu0 0.0
        %1200 = vmatprep.mubr.f32.mxu0 0.0
        %1201 = vmatmul.mubr.f32.gmra.mxu0 %v1131
        %v1202 = vpop.f32.mrf.mxu0
        %v1203 = vadd.f32 0.0, %v1202
        %v1204 = vpop.f32.mrf.mxu0
        %1205 = vmatprep.mubr.f32.mxu0 0.0
        %1206 = vmatmul.mubr.f32.gmra.mxu0 %v1134
        %v1207 = vpop.f32.mrf.mxu0
        %v1208 = vadd.f32 0.0, %v1207
        %v1209 = vpop.f32.mrf.mxu0
        %1210 = vdwg.mxu0
        %s1211 = scalar_lea.vmem [#allocation5], 32
        %v1212 = vld [vmem:[%s1211] sm:$0xff]
        %v1213 = vld [vmem:[%s1211 + $0x8] sm:$0xff]
        %v1214 = vld [vmem:[%s1211 + $0x10] sm:$0xff]
        %v1215 = vld [vmem:[%s1211 + $0x18] sm:$0xff]
        %1216 = vmatprep.subr.mxu0 0.0
        %1217 = vmatpush1.msra.mxu0 0.0
        %1218 = vmatprep.subr.mxu0 0.0
        %1219 = vmatpush1.msra.mxu0 0.0
        %1220 = vmatprep.subr.mxu0 0.0
        %1221 = vmatpush1.msra.mxu0 0.0
        %1222 = vmatprep.subr.mxu0 0.0
        %1223 = vmatpush1.msra.mxu0 0.0
        %1224 = vmatprep.subr.mxu0 0.0
        %1225 = vmatpush1.msra.mxu0 0.0
        %1226 = vmatprep.subr.mxu0 0.0
        %1227 = vmatpush1.msra.mxu0 0.0
        %1228 = vmatprep.subr.mxu0 0.0
        %1229 = vmatpush1.msra.mxu0 0.0
        %1230 = vmatprep.subr.mxu0 0.0
        %1231 = vmatpush1.msra.mxu0 0.0
        %1232 = vmatprep.subr.mxu0 0.0
        %1233 = vmatpush1.msra.mxu0 0.0
        %1234 = vmatprep.subr.mxu0 0.0
        %1235 = vmatpush1.msra.mxu0 0.0
        %1236 = vmatprep.subr.mxu0 0.0
        %1237 = vmatpush1.msra.mxu0 0.0
        %1238 = vmatprep.subr.mxu0 0.0
        %1239 = vmatpush1.msra.mxu0 0.0
        %1240 = vmatprep.subr.mxu0 0.0
        %1241 = vmatpush1.msra.mxu0 %v1215
        %1242 = vmatprep.subr.mxu0 0.0
        %1243 = vmatpush1.msra.mxu0 %v1214
        %1244 = vmatprep.subr.mxu0 0.0
        %1245 = vmatpush1.msra.mxu0 %v1213
        %1246 = vmatprep.subr.mxu0 0.0
        %1247 = vmatpush1.msra.mxu0 %v1212
        %1248 = vmatprep.subr.mxu0 0.0
        %1249 = vmatpush2.msra.mxu0 0.0
        %1250 = vmatprep.subr.mxu0 0.0
        %1251 = vmatpush2.msra.mxu0 0.0
        %1252 = vmatprep.subr.mxu0 0.0
        %1253 = vmatpush2.msra.mxu0 0.0
        %1254 = vmatprep.subr.mxu0 0.0
        %1255 = vmatpush2.msra.mxu0 0.0
        %1256 = vmatprep.subr.mxu0 0.0
        %1257 = vmatpush2.msra.mxu0 0.0
        %1258 = vmatprep.subr.mxu0 0.0
        %1259 = vmatpush2.msra.mxu0 0.0
        %1260 = vmatprep.subr.mxu0 0.0
        %1261 = vmatpush2.msra.mxu0 0.0
        %1262 = vmatprep.subr.mxu0 0.0
        %1263 = vmatpush2.msra.mxu0 0.0
        %1264 = vmatprep.subr.mxu0 0.0
        %1265 = vmatpush2.msra.mxu0 0.0
        %1266 = vmatprep.subr.mxu0 0.0
        %1267 = vmatpush2.msra.mxu0 0.0
        %1268 = vmatprep.subr.mxu0 0.0
        %1269 = vmatpush2.msra.mxu0 0.0
        %1270 = vmatprep.subr.mxu0 0.0
        %1271 = vmatpush2.msra.mxu0 0.0
        %1272 = vmatprep.subr.mxu0 0.0
        %1273 = vmatpush2.msra.mxu0 0.0
        %1274 = vmatprep.subr.mxu0 0.0
        %1275 = vmatpush2.msra.mxu0 0.0
        %1276 = vmatprep.subr.mxu0 0.0
        %1277 = vmatpush2.msra.mxu0 0.0
        %1278 = vmatprep.subr.mxu0 0.0
        %1279 = vmatpush2.msra.mxu0 0.0
        %1280 = vmatprep.mubr.f32.mxu0 0.0
        %1281 = vmatmul.mubr.f32.gmra.mxu0 %v1131
        %v1282 = vpop.f32.mrf.mxu0
        %v1283 = vadd.f32 0.0, %v1282
        %v1284 = vpop.f32.mrf.mxu0
        %1285 = vmatprep.mubr.f32.mxu0 0.0
        %1286 = vmatmul.mubr.f32.gmra.mxu0 %v1134
        %v1287 = vpop.f32.mrf.mxu0
        %v1288 = vadd.f32 0.0, %v1287
        %v1289 = vpop.f32.mrf.mxu0
        %1290 = vdwg.mxu0
        %1291 = vmatprep.subr.mxu0 0.0
        %1292 = vmatpush1.msra.mxu0 0.0
        %1293 = vmatprep.subr.mxu0 0.0
        %1294 = vmatpush1.msra.mxu0 0.0
        %1295 = vmatprep.subr.mxu0 0.0
        %1296 = vmatpush1.msra.mxu0 0.0
        %1297 = vmatprep.subr.mxu0 0.0
        %1298 = vmatpush1.msra.mxu0 0.0
        %1299 = vmatprep.subr.mxu0 0.0
        %1300 = vmatpush1.msra.mxu0 0.0
        %1301 = vmatprep.subr.mxu0 0.0
        %1302 = vmatpush1.msra.mxu0 0.0
        %1303 = vmatprep.subr.mxu0 0.0
        %1304 = vmatpush1.msra.mxu0 0.0
        %1305 = vmatprep.subr.mxu0 0.0
        %1306 = vmatpush1.msra.mxu0 0.0
        %1307 = vmatprep.subr.mxu0 0.0
        %1308 = vmatpush1.msra.mxu0 0.0
        %1309 = vmatprep.subr.mxu0 0.0
        %1310 = vmatpush1.msra.mxu0 0.0
        %1311 = vmatprep.subr.mxu0 0.0
        %1312 = vmatpush1.msra.mxu0 0.0
        %1313 = vmatprep.subr.mxu0 0.0
        %1314 = vmatpush1.msra.mxu0 0.0
        %1315 = vmatprep.subr.mxu0 0.0
        %1316 = vmatpush1.msra.mxu0 0.0
        %1317 = vmatprep.subr.mxu0 0.0
        %1318 = vmatpush1.msra.mxu0 0.0
        %1319 = vmatprep.subr.mxu0 0.0
        %1320 = vmatpush1.msra.mxu0 %v1288
        %1321 = vmatprep.subr.mxu0 0.0
        %1322 = vmatpush1.msra.mxu0 %v1283
        %1323 = vmatprep.subr.mxu0 0.0
        %1324 = vmatpush2.msra.mxu0 0.0
        %1325 = vmatprep.subr.mxu0 0.0
        %1326 = vmatpush2.msra.mxu0 0.0
        %1327 = vmatprep.subr.mxu0 0.0
        %1328 = vmatpush2.msra.mxu0 0.0
        %1329 = vmatprep.subr.mxu0 0.0
        %1330 = vmatpush2.msra.mxu0 0.0
        %1331 = vmatprep.subr.mxu0 0.0
        %1332 = vmatpush2.msra.mxu0 0.0
        %1333 = vmatprep.subr.mxu0 0.0
        %1334 = vmatpush2.msra.mxu0 0.0
        %1335 = vmatprep.subr.mxu0 0.0
        %1336 = vmatpush2.msra.mxu0 0.0
        %1337 = vmatprep.subr.mxu0 0.0
        %1338 = vmatpush2.msra.mxu0 0.0
        %1339 = vmatprep.subr.mxu0 0.0
        %1340 = vmatpush2.msra.mxu0 0.0
        %1341 = vmatprep.subr.mxu0 0.0
        %1342 = vmatpush2.msra.mxu0 0.0
        %1343 = vmatprep.subr.mxu0 0.0
        %1344 = vmatpush2.msra.mxu0 0.0
        %1345 = vmatprep.subr.mxu0 0.0
        %1346 = vmatpush2.msra.mxu0 0.0
        %1347 = vmatprep.subr.mxu0 0.0
        %1348 = vmatpush2.msra.mxu0 0.0
        %1349 = vmatprep.subr.mxu0 0.0
        %1350 = vmatpush2.msra.mxu0 0.0
        %1351 = vmatprep.subr.mxu0 0.0
        %1352 = vmatpush2.msra.mxu0 0.0
        %1353 = vmatprep.subr.mxu0 0.0
        %1354 = vmatpush2.msra.mxu0 0.0
        %1355 = vmatprep.mubr.f32.mxu0 0.0
        %1356 = vmatmul.mubr.f32.gmra.mxu0 %v388
        %v1357 = vpop.f32.mrf.mxu0
        %v1358 = vadd.f32 0.0, %v1357
        %v1359 = vpop.f32.mrf.mxu0
        %1360 = vmatprep.mubr.f32.mxu0 0.0
        %1361 = vmatmul.mubr.f32.gmra.mxu0 %v390
        %v1362 = vpop.f32.mrf.mxu0
        %v1363 = vadd.f32 0.0, %v1362
        %v1364 = vpop.f32.mrf.mxu0
        %1365 = vdwg.mxu0
        %1366 = vmatprep.subr.mxu0 0.0
        %1367 = vmatpush1.msra.mxu0 0.0
        %1368 = vmatprep.subr.mxu0 0.0
        %1369 = vmatpush1.msra.mxu0 0.0
        %1370 = vmatprep.subr.mxu0 0.0
        %1371 = vmatpush1.msra.mxu0 0.0
        %1372 = vmatprep.subr.mxu0 0.0
        %1373 = vmatpush1.msra.mxu0 0.0
        %1374 = vmatprep.subr.mxu0 0.0
        %1375 = vmatpush1.msra.mxu0 0.0
        %1376 = vmatprep.subr.mxu0 0.0
        %1377 = vmatpush1.msra.mxu0 0.0
        %1378 = vmatprep.subr.mxu0 0.0
        %1379 = vmatpush1.msra.mxu0 0.0
        %1380 = vmatprep.subr.mxu0 0.0
        %1381 = vmatpush1.msra.mxu0 0.0
        %1382 = vmatprep.subr.mxu0 0.0
        %1383 = vmatpush1.msra.mxu0 0.0
        %1384 = vmatprep.subr.mxu0 0.0
        %1385 = vmatpush1.msra.mxu0 0.0
        %1386 = vmatprep.subr.mxu0 0.0
        %1387 = vmatpush1.msra.mxu0 0.0
        %1388 = vmatprep.subr.mxu0 0.0
        %1389 = vmatpush1.msra.mxu0 0.0
        %1390 = vmatprep.subr.mxu0 0.0
        %1391 = vmatpush1.msra.mxu0 0.0
        %1392 = vmatprep.subr.mxu0 0.0
        %1393 = vmatpush1.msra.mxu0 0.0
        %1394 = vmatprep.subr.mxu0 0.0
        %1395 = vmatpush1.msra.mxu0 %v1208
        %1396 = vmatprep.subr.mxu0 0.0
        %1397 = vmatpush1.msra.mxu0 %v1203
        %1398 = vmatprep.subr.mxu0 0.0
        %1399 = vmatpush2.msra.mxu0 0.0
        %1400 = vmatprep.subr.mxu0 0.0
        %1401 = vmatpush2.msra.mxu0 0.0
        %1402 = vmatprep.subr.mxu0 0.0
        %1403 = vmatpush2.msra.mxu0 0.0
        %1404 = vmatprep.subr.mxu0 0.0
        %1405 = vmatpush2.msra.mxu0 0.0
        %1406 = vmatprep.subr.mxu0 0.0
        %1407 = vmatpush2.msra.mxu0 0.0
        %1408 = vmatprep.subr.mxu0 0.0
        %1409 = vmatpush2.msra.mxu0 0.0
        %1410 = vmatprep.subr.mxu0 0.0
        %1411 = vmatpush2.msra.mxu0 0.0
        %1412 = vmatprep.subr.mxu0 0.0
        %1413 = vmatpush2.msra.mxu0 0.0
        %1414 = vmatprep.subr.mxu0 0.0
        %1415 = vmatpush2.msra.mxu0 0.0
        %1416 = vmatprep.subr.mxu0 0.0
        %1417 = vmatpush2.msra.mxu0 0.0
        %1418 = vmatprep.subr.mxu0 0.0
        %1419 = vmatpush2.msra.mxu0 0.0
        %1420 = vmatprep.subr.mxu0 0.0
        %1421 = vmatpush2.msra.mxu0 0.0
        %1422 = vmatprep.subr.mxu0 0.0
        %1423 = vmatpush2.msra.mxu0 0.0
        %1424 = vmatprep.subr.mxu0 0.0
        %1425 = vmatpush2.msra.mxu0 0.0
        %1426 = vmatprep.subr.mxu0 0.0
        %1427 = vmatpush2.msra.mxu0 0.0
        %1428 = vmatprep.subr.mxu0 0.0
        %1429 = vmatpush2.msra.mxu0 0.0
        %1430 = vmatprep.mubr.f32.mxu0 0.0
        %1431 = vmatmul.mubr.f32.gmra.mxu0 %v467
        %v1432 = vpop.f32.mrf.mxu0
        %v1433 = vadd.f32 %v1358, %v1432
        %v1434 = vpop.f32.mrf.mxu0
        %1435 = vmatprep.mubr.f32.mxu0 0.0
        %1436 = vmatmul.mubr.f32.gmra.mxu0 %v469
        %v1437 = vpop.f32.mrf.mxu0
        %v1438 = vadd.f32 %v1363, %v1437
        %v1439 = vpop.f32.mrf.mxu0
        %1440 = vdwg.mxu0
        %s1441 = scalar_lea.vmem [#allocation5], 64
        %v1442 = vld [vmem:[%s1441] sm:$0xff]
        %v1443 = vld [vmem:[%s1441 + $0x8] sm:$0xff]
        %v1444 = vld [vmem:[%s1441 + $0x10] sm:$0xff]
        %v1445 = vld [vmem:[%s1441 + $0x18] sm:$0xff]
        %1446 = vmatprep.subr.mxu0 0.0
        %1447 = vmatpush1.msra.mxu0 0.0
        %1448 = vmatprep.subr.mxu0 0.0
        %1449 = vmatpush1.msra.mxu0 0.0
        %1450 = vmatprep.subr.mxu0 0.0
        %1451 = vmatpush1.msra.mxu0 0.0
        %1452 = vmatprep.subr.mxu0 0.0
        %1453 = vmatpush1.msra.mxu0 0.0
        %1454 = vmatprep.subr.mxu0 0.0
        %1455 = vmatpush1.msra.mxu0 0.0
        %1456 = vmatprep.subr.mxu0 0.0
        %1457 = vmatpush1.msra.mxu0 0.0
        %1458 = vmatprep.subr.mxu0 0.0
        %1459 = vmatpush1.msra.mxu0 0.0
        %1460 = vmatprep.subr.mxu0 0.0
        %1461 = vmatpush1.msra.mxu0 0.0
        %1462 = vmatprep.subr.mxu0 0.0
        %1463 = vmatpush1.msra.mxu0 0.0
        %1464 = vmatprep.subr.mxu0 0.0
        %1465 = vmatpush1.msra.mxu0 0.0
        %1466 = vmatprep.subr.mxu0 0.0
        %1467 = vmatpush1.msra.mxu0 0.0
        %1468 = vmatprep.subr.mxu0 0.0
        %1469 = vmatpush1.msra.mxu0 0.0
        %1470 = vmatprep.subr.mxu0 0.0
        %1471 = vmatpush1.msra.mxu0 %v1445
        %1472 = vmatprep.subr.mxu0 0.0
        %1473 = vmatpush1.msra.mxu0 %v1444
        %1474 = vmatprep.subr.mxu0 0.0
        %1475 = vmatpush1.msra.mxu0 %v1443
        %1476 = vmatprep.subr.mxu0 0.0
        %1477 = vmatpush1.msra.mxu0 %v1442
        %1478 = vmatprep.subr.mxu0 0.0
        %1479 = vmatpush2.msra.mxu0 0.0
        %1480 = vmatprep.subr.mxu0 0.0
        %1481 = vmatpush2.msra.mxu0 0.0
        %1482 = vmatprep.subr.mxu0 0.0
        %1483 = vmatpush2.msra.mxu0 0.0
        %1484 = vmatprep.subr.mxu0 0.0
        %1485 = vmatpush2.msra.mxu0 0.0
        %1486 = vmatprep.subr.mxu0 0.0
        %1487 = vmatpush2.msra.mxu0 0.0
        %1488 = vmatprep.subr.mxu0 0.0
        %1489 = vmatpush2.msra.mxu0 0.0
        %1490 = vmatprep.subr.mxu0 0.0
        %1491 = vmatpush2.msra.mxu0 0.0
        %1492 = vmatprep.subr.mxu0 0.0
        %1493 = vmatpush2.msra.mxu0 0.0
        %1494 = vmatprep.subr.mxu0 0.0
        %1495 = vmatpush2.msra.mxu0 0.0
        %1496 = vmatprep.subr.mxu0 0.0
        %1497 = vmatpush2.msra.mxu0 0.0
        %1498 = vmatprep.subr.mxu0 0.0
        %1499 = vmatpush2.msra.mxu0 0.0
        %1500 = vmatprep.subr.mxu0 0.0
        %1501 = vmatpush2.msra.mxu0 0.0
        %1502 = vmatprep.subr.mxu0 0.0
        %1503 = vmatpush2.msra.mxu0 0.0
        %1504 = vmatprep.subr.mxu0 0.0
        %1505 = vmatpush2.msra.mxu0 0.0
        %1506 = vmatprep.subr.mxu0 0.0
        %1507 = vmatpush2.msra.mxu0 0.0
        %1508 = vmatprep.subr.mxu0 0.0
        %1509 = vmatpush2.msra.mxu0 0.0
        %1510 = vmatprep.mubr.f32.mxu0 0.0
        %1511 = vmatmul.mubr.f32.gmra.mxu0 %v1131
        %v1512 = vpop.f32.mrf.mxu0
        %v1513 = vadd.f32 0.0, %v1512
        %v1514 = vpop.f32.mrf.mxu0
        %1515 = vmatprep.mubr.f32.mxu0 0.0
        %1516 = vmatmul.mubr.f32.gmra.mxu0 %v1134
        %v1517 = vpop.f32.mrf.mxu0
        %v1518 = vadd.f32 0.0, %v1517
        %v1519 = vpop.f32.mrf.mxu0
        %1520 = vdwg.mxu0
        %1521 = vmatprep.subr.mxu0 0.0
        %1522 = vmatpush1.msra.mxu0 0.0
        %1523 = vmatprep.subr.mxu0 0.0
        %1524 = vmatpush1.msra.mxu0 0.0
        %1525 = vmatprep.subr.mxu0 0.0
        %1526 = vmatpush1.msra.mxu0 0.0
        %1527 = vmatprep.subr.mxu0 0.0
        %1528 = vmatpush1.msra.mxu0 0.0
        %1529 = vmatprep.subr.mxu0 0.0
        %1530 = vmatpush1.msra.mxu0 0.0
        %1531 = vmatprep.subr.mxu0 0.0
        %1532 = vmatpush1.msra.mxu0 0.0
        %1533 = vmatprep.subr.mxu0 0.0
        %1534 = vmatpush1.msra.mxu0 0.0
        %1535 = vmatprep.subr.mxu0 0.0
        %1536 = vmatpush1.msra.mxu0 0.0
        %1537 = vmatprep.subr.mxu0 0.0
        %1538 = vmatpush1.msra.mxu0 0.0
        %1539 = vmatprep.subr.mxu0 0.0
        %1540 = vmatpush1.msra.mxu0 0.0
        %1541 = vmatprep.subr.mxu0 0.0
        %1542 = vmatpush1.msra.mxu0 0.0
        %1543 = vmatprep.subr.mxu0 0.0
        %1544 = vmatpush1.msra.mxu0 0.0
        %1545 = vmatprep.subr.mxu0 0.0
        %1546 = vmatpush1.msra.mxu0 0.0
        %1547 = vmatprep.subr.mxu0 0.0
        %1548 = vmatpush1.msra.mxu0 0.0
        %1549 = vmatprep.subr.mxu0 0.0
        %1550 = vmatpush1.msra.mxu0 %v1518
        %1551 = vmatprep.subr.mxu0 0.0
        %1552 = vmatpush1.msra.mxu0 %v1513
        %1553 = vmatprep.subr.mxu0 0.0
        %1554 = vmatpush2.msra.mxu0 0.0
        %1555 = vmatprep.subr.mxu0 0.0
        %1556 = vmatpush2.msra.mxu0 0.0
        %1557 = vmatprep.subr.mxu0 0.0
        %1558 = vmatpush2.msra.mxu0 0.0
        %1559 = vmatprep.subr.mxu0 0.0
        %1560 = vmatpush2.msra.mxu0 0.0
        %1561 = vmatprep.subr.mxu0 0.0
        %1562 = vmatpush2.msra.mxu0 0.0
        %1563 = vmatprep.subr.mxu0 0.0
        %1564 = vmatpush2.msra.mxu0 0.0
        %1565 = vmatprep.subr.mxu0 0.0
        %1566 = vmatpush2.msra.mxu0 0.0
        %1567 = vmatprep.subr.mxu0 0.0
        %1568 = vmatpush2.msra.mxu0 0.0
        %1569 = vmatprep.subr.mxu0 0.0
        %1570 = vmatpush2.msra.mxu0 0.0
        %1571 = vmatprep.subr.mxu0 0.0
        %1572 = vmatpush2.msra.mxu0 0.0
        %1573 = vmatprep.subr.mxu0 0.0
        %1574 = vmatpush2.msra.mxu0 0.0
        %1575 = vmatprep.subr.mxu0 0.0
        %1576 = vmatpush2.msra.mxu0 0.0
        %1577 = vmatprep.subr.mxu0 0.0
        %1578 = vmatpush2.msra.mxu0 0.0
        %1579 = vmatprep.subr.mxu0 0.0
        %1580 = vmatpush2.msra.mxu0 0.0
        %1581 = vmatprep.subr.mxu0 0.0
        %1582 = vmatpush2.msra.mxu0 0.0
        %1583 = vmatprep.subr.mxu0 0.0
        %1584 = vmatpush2.msra.mxu0 0.0
        %1585 = vmatprep.mubr.f32.mxu0 0.0
        %1586 = vmatmul.mubr.f32.gmra.mxu0 %v556
        %v1587 = vpop.f32.mrf.mxu0
        %v1588 = vadd.f32 0.0, %v1587
        %v1589 = vpop.f32.mrf.mxu0
        %1590 = vmatprep.mubr.f32.mxu0 0.0
        %1591 = vmatmul.mubr.f32.gmra.mxu0 %v558
        %v1592 = vpop.f32.mrf.mxu0
        %v1593 = vadd.f32 0.0, %v1592
        %v1594 = vpop.f32.mrf.mxu0
        %1595 = vdwg.mxu0
        %v1596 = vadd.f32 %v1433, %v1588
        %v1597 = vadd.f32 %v1438, %v1593
        %v1598 = vld [vmem:[%s7] sm:$0x1]
        %v1600 = vlaneseq
        %v1601 = vshrl.u32 %v1600, 7
        %v1602 = vsub.s32 0, %v1601
        %v1603 = vrot.slane %v1598, %v1602
        %v1605 = vadd.f32 %v1596, %v1603
        %v1606 = vadd.f32 %v1597, %v1603
        %v1607 = vxor.u32 %v1605, 2147483648
        %v1608 = vxor.u32 %v1606, 2147483648
        %v1609 = vmul.f32 %v1607, 1.442695
        %v1610 = vpow.pop %v1609
        %v1611 = vmul.f32 %v1608, 1.442695
        %v1612 = vpow.pop %v1611
        %v1613 = vadd.f32 %v1610, 1.0
        %v1614 = vadd.f32 %v1612, 1.0
        %v1615 = vrcp.pop %v1613
        %v1616 = vmul.f32 1.0, %v1615
        %v1617 = vrcp.pop %v1614
        %v1618 = vmul.f32 1.0, %v1617
        %1619 = vst [vmem:[%s343] sm:$0xff] %v1616
        %1620 = vst [vmem:[%s343 + $0x8] sm:$0xff] %v1618
        %s1621 = sand.u32 %s210, 1
        %s1622 = scalar_lea.sflag [#allocation4], %s1621
        %s1623 = sand.u32 %s210, 1
        %s1624 = smul.addr %s1623, 16
        %s1625 = scalar_lea.vmem [#allocation7], %s1624
        // Predicated region
        $region61: #{tpu_custom_call.1} parent=51 // pred_check
          %p1626 = pneg %p220
        $region62: #{tpu_custom_call.1} parent=51 // pred_check_branch
          %1628 = sbr.rel (%p1626) target = $region64
        $region63: #{tpu_custom_call.1} parent=51 // pred_region
          %s1630 = ssub.s32 256, 256
          %1631 = vsyncadd %s1622, %s1630
          %s1632 = smul.addr %s24, 2
          %s1633 = smul.addr %s1632, 128
          %s1634 = scalar_lea.hbm %s8, %s1633
          %s1635 = sshll.u32 %s1625, 4
          %s1636 = int_to_ptr.vmem [resolvable:$true] %s1635
          %1641 = dma.vmem_to_hbm [thread:$0]  %s1636, 256, %s1634, %s1622, 128, 128, 8
        $region64: #{tpu_custom_call.1} parent=51 // pred_fallthru
          _
      $region52: #{tpu_custom_call.1} parent=5 // pred_fallthru
        _
      %p1642 = scmp.le.s32.totalorder 2, %s19
      // Predicated region
      $region65: #{tpu_custom_call.1} parent=5 // pred_check
        %p1643 = pneg %p1642
      $region66: #{tpu_custom_call.1} parent=5 // pred_check_branch
        %1645 = sbr.rel (%p1643) target = $region68
      $region67: #{tpu_custom_call.1} parent=5 // pred_region
        %s1646 = ssub.s32 %s19, 2
        // Predicated region
        $region69: #{tpu_custom_call.1} parent=67 // pred_check
          %p1647 = pneg %p226
        $region70: #{tpu_custom_call.1} parent=67 // pred_check_branch
          %1649 = sbr.rel (%p1647) target = $region72
        $region71: #{tpu_custom_call.1} parent=67 // pred_region
          %s1650 = sand.u32 %s211, 1
          %s1651 = scalar_lea.sflag [#allocation4], %s1650
          %s1652 = sand.u32 %s211, 1
          %s1653 = smul.addr %s1652, 16
          %s1654 = scalar_lea.vmem [#allocation7], %s1653
          %1655 = dma.done %s1651, 256
        $region72: #{tpu_custom_call.1} parent=67 // pred_fallthru
          _
      $region68: #{tpu_custom_call.1} parent=5 // pred_fallthru
        _
    $region6: #{tpu_custom_call.1} parent=1 // loop_footer
      %s23 = sadd.s32 1, %s19
    $region7: #{tpu_custom_call.1} parent=1 // loop_footer_branch
      %18 = sbr.rel target = $region3
    $region8: #{tpu_custom_call.1} parent=1 // loop_exit
      _
    %1656 = vsyncpa [#allocation3], 1
    %s1657 = scalar_lea.sflag [#allocation3], 1
    %1658 = vsyncpa %s1657, 1
    %1659 = vsyncpa [#allocation6], 1
    %1660 = vsyncpa [#allocation4], 1
    %s1661 = scalar_lea.sflag [#allocation4], 1
    %1662 = vsyncpa %s1661, 1

</llo_original>
